<compile_context>
chip_gen: v7x
topology: tpu7x:2x2x1
jax: 0.10.0
libtpu: 0.0.40
codegen_flags: <defaults>
</compile_context>

<pallas_src>
import functools

import jax
import jax.numpy as jnp
from jax import lax
from jax.experimental import pallas as pl
from jax.experimental.pallas import tpu as pltpu

_C1 = 0.01 ** 2
_C2 = 0.03 ** 2

# ~1 MiB of f32 per input block: big enough to amortize the ~0.35 us per-step
# pipeline overhead, small enough that inputs + output + scratch + temporaries
# stay well inside scoped VMEM on v5e / v6e / v7x.
_TARGET_BLOCK_ELEMS = 256 * 1024


def _hsum3(v2, w, use_lane_roll):
    """Horizontal 3-tap sum with 1-px reflection on a 2-D (rows, W) value."""
    if use_lane_roll:
        # Lane rotations go to the XLU (otherwise idle here).  The two
        # wrapped-around edge columns are overwritten below, so the result is
        # independent of the roll direction convention.
        s = v2 + pltpu.roll(v2, 1, 1) + pltpu.roll(v2, w - 1, 1)
        lane = lax.broadcasted_iota(jnp.int32, (1, w), 1)
        s = jnp.where(lane == 0, v2[:, 0:1] + 2.0 * v2[:, 1:2], s)
        s = jnp.where(lane == w - 1, v2[:, w - 1:w] + 2.0 * v2[:, w - 2:w - 1], s)
        return s
    # Fallback for W not a multiple of 128: shifted copies via concatenate
    # (reflection baked into the edge columns).
    left = jnp.concatenate([v2[:, 1:2], v2[:, 0:w - 1]], axis=1)
    right = jnp.concatenate([v2[:, 1:w], v2[:, w - 2:w - 1]], axis=1)
    return left + v2 + right


def _ssim_kernel(*refs, has_halo, use_lane_roll, c1, c2):
    if has_halo:
        (x_ref, y_ref, xt_ref, xb_ref, yt_ref, yb_ref,
         o_ref, xpad_ref, ypad_ref) = refs
    else:
        x_ref, y_ref, o_ref, xpad_ref, ypad_ref = refs

    tbc, th, w = x_ref.shape
    f32 = jnp.float32

    # ---- build the row-padded planes in VMEM (reflection / neighbour halo) ---
    xpad_ref[:, 1:th + 1, :] = x_ref[...].astype(f32)
    ypad_ref[:, 1:th + 1, :] = y_ref[...].astype(f32)

    if has_halo:
        # Neighbouring image rows delivered by the small (tile_bc, 8, W) specs.
        xpad_ref[:, 0:1, :] = xt_ref[:, 7:8, :].astype(f32)
        xpad_ref[:, th + 1:th + 2, :] = xb_ref[:, 0:1, :].astype(f32)
        ypad_ref[:, 0:1, :] = yt_ref[:, 7:8, :].astype(f32)
        ypad_ref[:, th + 1:th + 2, :] = yb_ref[:, 0:1, :].astype(f32)

        r = pl.program_id(1)

        @pl.when(r == 0)                       # image top: reflect row 1
        def _():
            xpad_ref[:, 0:1, :] = xpad_ref[:, 2:3, :]
            ypad_ref[:, 0:1, :] = ypad_ref[:, 2:3, :]

        @pl.when(r == pl.num_programs(1) - 1)  # image bottom: reflect row H-2
        def _():
            xpad_ref[:, th + 1:th + 2, :] = xpad_ref[:, th - 1:th, :]
            ypad_ref[:, th + 1:th + 2, :] = ypad_ref[:, th - 1:th, :]
    else:
        # Whole image height is in this block: reflect both edges.
        xpad_ref[:, 0:1, :] = xpad_ref[:, 2:3, :]
        xpad_ref[:, th + 1:th + 2, :] = xpad_ref[:, th - 1:th, :]
        ypad_ref[:, 0:1, :] = ypad_ref[:, 2:3, :]
        ypad_ref[:, th + 1:th + 2, :] = ypad_ref[:, th - 1:th, :]

    xp = xpad_ref[...]          # (tbc, th+2, w)
    yp = ypad_ref[...]

    def box(a):
        """3x3 box mean of a row-padded (tbc, th+2, w) field -> (tbc*th, w)."""
        v = a[:, 0:th, :] + a[:, 1:th + 1, :] + a[:, 2:th + 2, :]
        v2 = v.reshape(tbc * th, w)            # leading-dim merge: free relayout
        return _hsum3(v2, w, use_lane_roll) * (1.0 / 9.0)

    mu_x = box(xp)
    mu_y = box(yp)
    e_xx = box(xp * xp)
    e_yy = box(yp * yp)
    e_xy = box(xp * yp)

    mu_x2 = mu_x * mu_x
    mu_y2 = mu_y * mu_y
    mu_xy = mu_x * mu_y
    sigma_x = e_xx - mu_x2
    sigma_y = e_yy - mu_y2
    sigma_xy = e_xy - mu_xy

    ssim_n = (2.0 * mu_xy + c1) * (2.0 * sigma_xy + c2)
    ssim_d = (mu_x2 + mu_y2 + c1) * (sigma_x + sigma_y + c2)
    out2 = jnp.clip((1.0 - ssim_n / ssim_d) * 0.5, 0.0, 1.0)
    o_ref[...] = out2.reshape(tbc, th, w).astype(o_ref.dtype)


def _choose_tiles(bc, h, w):
    """Pick (tile_bc, tile_h): divisor tiles, >=2 grid steps when possible."""
    plane = h * w
    if plane <= _TARGET_BLOCK_ELEMS:
        cap = max(1, _TARGET_BLOCK_ELEMS // plane)
        if bc >= 2:
            cap = min(cap, bc // 2)     # >= 2 grid steps: pipelining + v7x's 2 TCs
        cap = max(1, min(cap, bc))
        tile_bc = 1
        for d in range(1, cap + 1):
            if bc % d == 0:
                tile_bc = d
        return tile_bc, h
    if h % 8 == 0 and h >= 16:
        # Large planes: one plane per step, H-row tiling with a 1-row halo.
        cap_h = max(8, _TARGET_BLOCK_ELEMS // w)
        tile_h = 8
        for t in range(16, h, 8):
            if h % t == 0 and t <= cap_h:
                tile_h = t
        return 1, tile_h
    # TODO(synk): very large planes with H % 8 != 0 fall back to whole-plane
    # blocks; raise vmem_limit_bytes further if such shapes ever appear.
    return 1, h


def ssim(x, y, *, tile_bc=None, tile_h=None):
    """Pallas TPU implementation of the SSIM module forward pass (NCHW)."""
    assert x.shape == y.shape and x.ndim == 4, "expected NCHW inputs"
    b, c, h, w = x.shape
    assert h >= 2 and w >= 2, "ReflectionPad2d(1) needs H, W >= 2"
    bc = b * c
    out_dtype = x.dtype

    # Pure metadata reshapes -- no HBM copies.
    x2 = x.reshape(bc, h, w)
    y2 = y.reshape(bc, h, w)

    auto_bc, auto_h = _choose_tiles(bc, h, w)
    if tile_bc is None:
        tile_bc = auto_bc
    if tile_h is None:
        tile_h = auto_h
    assert bc % tile_bc == 0, "tile_bc must divide B*C"
    assert tile_h == h or (h % tile_h == 0 and tile_h % 8 == 0), \
        "row tiles must divide H and be a multiple of 8"
    has_halo = tile_h < h

    n_bc = bc // tile_bc
    kernel = functools.partial(
        _ssim_kernel,
        has_halo=has_halo,
        use_lane_roll=(w % 128 == 0),
        c1=_C1, c2=_C2)

    main_shape = (tile_bc, tile_h, w)
    if has_halo:
        n_rows = h // tile_h
        thb = tile_h // 8
        nrb = h // 8
        main_spec = pl.BlockSpec(main_shape, lambda i, j: (i, j, 0))
        # 8-row strips holding the rows just above / below the current tile.
        top_spec = pl.BlockSpec(
            (tile_bc, 8, w), lambda i, j: (i, jnp.maximum(j * thb - 1, 0), 0))
        bot_spec = pl.BlockSpec(
            (tile_bc, 8, w), lambda i, j: (i, jnp.minimum((j + 1) * thb, nrb - 1), 0))
        in_specs = [main_spec, main_spec, top_spec, bot_spec, top_spec, bot_spec]
        operands = (x2, y2, x2, x2, y2, y2)
        out_spec = pl.BlockSpec(main_shape, lambda i, j: (i, j, 0))
        grid = (n_bc, n_rows)
        dims = ("parallel", "parallel")
    else:
        main_spec = pl.BlockSpec(main_shape, lambda i: (i, 0, 0))
        in_specs = [main_spec, main_spec]
        operands = (x2, y2)
        out_spec = main_spec
        grid = (n_bc,)
        dims = ("parallel",)

    n_px = bc * h * w
    out = pl.pallas_call(
        kernel,
        out_shape=jax.ShapeDtypeStruct((bc, h, w), out_dtype),
        grid=grid,
        in_specs=in_specs,
        out_specs=out_spec,
        scratch_shapes=[
            pltpu.VMEM((tile_bc, tile_h + 2, w), jnp.float32),
            pltpu.VMEM((tile_bc, tile_h + 2, w), jnp.float32),
        ],
        compiler_params=pltpu.CompilerParams(
            dimension_semantics=dims,
            vmem_limit_bytes=48 * 1024 * 1024),
        cost_estimate=pl.CostEstimate(
            flops=60 * n_px,
            transcendentals=0,
            bytes_accessed=n_px * (2 * x.dtype.itemsize
                                   + jnp.dtype(out_dtype).itemsize)),
    )(*operands)

    return out.reshape(b, c, h, w)


def ssim_ref(x, y):
    """Pure-JAX reference: direct transcription of the PyTorch module."""
    x = x.astype(jnp.float32)
    y = y.astype(jnp.float32)
    h, w = x.shape[2], x.shape[3]
    pad_cfg = ((0, 0), (0, 0), (1, 1), (1, 1))
    xp = jnp.pad(x, pad_cfg, mode="reflect")
    yp = jnp.pad(y, pad_cfg, mode="reflect")

    def pool(a):
        s = 0.0
        for di in range(3):
            for dj in range(3):
                s = s + a[:, :, di:di + h, dj:dj + w]
        return s / 9.0

    mu_x, mu_y = pool(xp), pool(yp)
    sigma_x = pool(xp * xp) - mu_x ** 2
    sigma_y = pool(yp * yp) - mu_y ** 2
    sigma_xy = pool(xp * yp) - mu_x * mu_y
    n = (2.0 * mu_x * mu_y + _C1) * (2.0 * sigma_xy + _C2)
    d = (mu_x ** 2 + mu_y ** 2 + _C1) * (sigma_x + sigma_y + _C2)
    return jnp.clip((1.0 - n / d) * 0.5, 0.0, 1.0)


if __name__ == "__main__":
    key = jax.random.PRNGKey(0)

    cases = [
        # lane-aligned W, batch*channel tiling (2 parallel grid steps)
        ((2, 4, 16, 128), {}),
        # H-row tiling + halo path (grid (2, 4)), forced via explicit tiles
        ((1, 2, 64, 128), dict(tile_bc=1, tile_h=16)),
        # non-128 W: concatenate fallback for the horizontal sums
        ((2, 3, 16, 16), {}),
    ]

    for i, (shape, kwargs) in enumerate(cases):
        key, k1, k2 = jax.random.split(key, 3)
        x = jax.random.uniform(k1, shape, jnp.float32)
        y = jax.random.uniform(k2, shape, jnp.float32)

        out = jax.block_until_ready(ssim(x, y, **kwargs))
        ref = ssim_ref(x, y)

        assert out.shape == shape, (i, out.shape)
        max_err = float(jnp.max(jnp.abs(out - ref)))
        assert jnp.allclose(out, ref, rtol=1e-5, atol=1e-5), (i, max_err)

    print("KERNEL_OK")
</pallas_src>

<mosaic_0001>
module attributes {stable_mosaic.version = 11 : i64} {
  func.func @_ssim_kernel(%arg0: i32, %arg1: memref<4x16x128xf32, #tpu.memory_space<vmem>>, %arg2: memref<4x16x128xf32, #tpu.memory_space<vmem>>, %arg3: memref<4x16x128xf32, #tpu.memory_space<vmem>>, %arg4: memref<4x18x128xf32, #tpu.memory_space<vmem>>, %arg5: memref<4x18x128xf32, #tpu.memory_space<vmem>>) attributes {dimension_semantics = [#tpu.dimension_semantics<parallel>], iteration_bounds = array<i64: 2>, scalar_prefetch = 0 : i64, scratch_operands = 2 : i64, tpu.core_type = #tpu.core_type<tc>, window_params = [{transform_indices = @transform_0, window_bounds = array<i64: 4, 16, 128>}, {transform_indices = @transform_1, window_bounds = array<i64: 4, 16, 128>}, {transform_indices = @transform_2, window_bounds = array<i64: 4, 16, 128>}]} {
    %c0 = arith.constant 0 : index
    %c0_0 = arith.constant 0 : index
    %c0_1 = arith.constant 0 : index
    %0 = vector.load %arg1[%c0, %c0_0, %c0_1] : memref<4x16x128xf32, #tpu.memory_space<vmem>>, vector<4x16x128xf32>
    %c0_2 = arith.constant 0 : index
    %c1 = arith.constant 1 : index
    %c0_3 = arith.constant 0 : index
    %1 = vector.load %arg4[%c0_2, %c1, %c0_3] : memref<4x18x128xf32, #tpu.memory_space<vmem>>, vector<4x16x128xf32>
    tpu.vector_store %arg4[%c0_2, %c1, %c0_3], %0 {strides = array<i32>} : memref<4x18x128xf32, #tpu.memory_space<vmem>>, vector<4x16x128xf32>,
    %c0_4 = arith.constant 0 : index
    %c0_5 = arith.constant 0 : index
    %c0_6 = arith.constant 0 : index
    %2 = vector.load %arg2[%c0_4, %c0_5, %c0_6] : memref<4x16x128xf32, #tpu.memory_space<vmem>>, vector<4x16x128xf32>
    %c0_7 = arith.constant 0 : index
    %c1_8 = arith.constant 1 : index
    %c0_9 = arith.constant 0 : index
    %3 = vector.load %arg5[%c0_7, %c1_8, %c0_9] : memref<4x18x128xf32, #tpu.memory_space<vmem>>, vector<4x16x128xf32>
    tpu.vector_store %arg5[%c0_7, %c1_8, %c0_9], %2 {strides = array<i32>} : memref<4x18x128xf32, #tpu.memory_space<vmem>>, vector<4x16x128xf32>,
    %c0_10 = arith.constant 0 : index
    %c2 = arith.constant 2 : index
    %c0_11 = arith.constant 0 : index
    %4 = vector.load %arg4[%c0_10, %c2, %c0_11] : memref<4x18x128xf32, #tpu.memory_space<vmem>>, vector<4x1x128xf32>
    %c0_12 = arith.constant 0 : index
    %c0_13 = arith.constant 0 : index
    %c0_14 = arith.constant 0 : index
    %5 = vector.load %arg4[%c0_12, %c0_13, %c0_14] : memref<4x18x128xf32, #tpu.memory_space<vmem>>, vector<4x1x128xf32>
    tpu.vector_store %arg4[%c0_12, %c0_13, %c0_14], %4 {strides = array<i32>} : memref<4x18x128xf32, #tpu.memory_space<vmem>>, vector<4x1x128xf32>,
    %c0_15 = arith.constant 0 : index
    %c15 = arith.constant 15 : index
    %c0_16 = arith.constant 0 : index
    %6 = vector.load %arg4[%c0_15, %c15, %c0_16] : memref<4x18x128xf32, #tpu.memory_space<vmem>>, vector<4x1x128xf32>
    %c0_17 = arith.constant 0 : index
    %c17 = arith.constant 17 : index
    %c0_18 = arith.constant 0 : index
    %7 = vector.load %arg4[%c0_17, %c17, %c0_18] : memref<4x18x128xf32, #tpu.memory_space<vmem>>, vector<4x1x128xf32>
    tpu.vector_store %arg4[%c0_17, %c17, %c0_18], %6 {strides = array<i32>} : memref<4x18x128xf32, #tpu.memory_space<vmem>>, vector<4x1x128xf32>,
    %c0_19 = arith.constant 0 : index
    %c2_20 = arith.constant 2 : index
    %c0_21 = arith.constant 0 : index
    %8 = vector.load %arg5[%c0_19, %c2_20, %c0_21] : memref<4x18x128xf32, #tpu.memory_space<vmem>>, vector<4x1x128xf32>
    %c0_22 = arith.constant 0 : index
    %c0_23 = arith.constant 0 : index
    %c0_24 = arith.constant 0 : index
    %9 = vector.load %arg5[%c0_22, %c0_23, %c0_24] : memref<4x18x128xf32, #tpu.memory_space<vmem>>, vector<4x1x128xf32>
    tpu.vector_store %arg5[%c0_22, %c0_23, %c0_24], %8 {strides = array<i32>} : memref<4x18x128xf32, #tpu.memory_space<vmem>>, vector<4x1x128xf32>,
    %c0_25 = arith.constant 0 : index
    %c15_26 = arith.constant 15 : index
    %c0_27 = arith.constant 0 : index
    %10 = vector.load %arg5[%c0_25, %c15_26, %c0_27] : memref<4x18x128xf32, #tpu.memory_space<vmem>>, vector<4x1x128xf32>
    %c0_28 = arith.constant 0 : index
    %c17_29 = arith.constant 17 : index
    %c0_30 = arith.constant 0 : index
    %11 = vector.load %arg5[%c0_28, %c17_29, %c0_30] : memref<4x18x128xf32, #tpu.memory_space<vmem>>, vector<4x1x128xf32>
    tpu.vector_store %arg5[%c0_28, %c17_29, %c0_30], %10 {strides = array<i32>} : memref<4x18x128xf32, #tpu.memory_space<vmem>>, vector<4x1x128xf32>,
    %c0_31 = arith.constant 0 : index
    %c0_32 = arith.constant 0 : index
    %c0_33 = arith.constant 0 : index
    %12 = vector.load %arg4[%c0_31, %c0_32, %c0_33] : memref<4x18x128xf32, #tpu.memory_space<vmem>>, vector<4x18x128xf32>
    %c0_34 = arith.constant 0 : index
    %c0_35 = arith.constant 0 : index
    %c0_36 = arith.constant 0 : index
    %13 = vector.load %arg5[%c0_34, %c0_35, %c0_36] : memref<4x18x128xf32, #tpu.memory_space<vmem>>, vector<4x18x128xf32>
    %14 = vector.extract_strided_slice %12 {offsets = [0, 0, 0], sizes = [4, 16, 128], strides = [1, 1, 1]} : vector<4x18x128xf32> to vector<4x16x128xf32>
    %15 = vector.extract_strided_slice %12 {offsets = [0, 1, 0], sizes = [4, 16, 128], strides = [1, 1, 1]} : vector<4x18x128xf32> to vector<4x16x128xf32>
    %16 = arith.addf %14, %15 : vector<4x16x128xf32>
    %17 = vector.extract_strided_slice %12 {offsets = [0, 2, 0], sizes = [4, 16, 128], strides = [1, 1, 1]} : vector<4x18x128xf32> to vector<4x16x128xf32>
    %18 = arith.addf %16, %17 : vector<4x16x128xf32>
    %19 = vector.shape_cast %18 : vector<4x16x128xf32> to vector<64x128xf32>
    %c1_i32 = arith.constant 1 : i32
    %20 = tpu.dynamic_rotate %19 by %c1_i32 dim 1 : vector<64x128xf32>, i32 -> vector<64x128xf32>
    %21 = arith.addf %19, %20 : vector<64x128xf32>
    %c127_i32 = arith.constant 127 : i32
    %22 = tpu.dynamic_rotate %19 by %c127_i32 dim 1 : vector<64x128xf32>, i32 -> vector<64x128xf32>
    %23 = arith.addf %21, %22 : vector<64x128xf32>
    %24 = tpu.iota {dimensions = array<i32: 1>} : vector<1x128xi32>
    %c0_i32 = arith.constant 0 : i32
    %25 = vector.broadcast %c0_i32 : i32 to vector<1x128xi32>
    %26 = arith.cmpi eq, %24, %25 : vector<1x128xi32>
    %27 = vector.extract_strided_slice %19 {offsets = [0, 0], sizes = [64, 1], strides = [1, 1]} : vector<64x128xf32> to vector<64x1xf32>
    %28 = vector.extract_strided_slice %19 {offsets = [0, 1], sizes = [64, 1], strides = [1, 1]} : vector<64x128xf32> to vector<64x1xf32>
    %cst = arith.constant 2.000000e+00 : f32
    %29 = vector.broadcast %cst : f32 to vector<64x1xf32>
    %30 = arith.mulf %29, %28 : vector<64x1xf32>
    %31 = arith.addf %27, %30 : vector<64x1xf32>
    %32 = vector.shape_cast %26 : vector<1x128xi1> to vector<1x128xi1>
    %33 = vector.broadcast %32 : vector<1x128xi1> to vector<64x128xi1>
    %34 = vector.shape_cast %31 : vector<64x1xf32> to vector<64x1xf32>
    %35 = vector.broadcast %34 : vector<64x1xf32> to vector<64x128xf32>
    %36 = arith.select %33, %35, %23 : vector<64x128xi1>, vector<64x128xf32>
    %c127_i32_37 = arith.constant 127 : i32
    %37 = vector.broadcast %c127_i32_37 : i32 to vector<1x128xi32>
    %38 = arith.cmpi eq, %24, %37 : vector<1x128xi32>
    %39 = vector.extract_strided_slice %19 {offsets = [0, 127], sizes = [64, 1], strides = [1, 1]} : vector<64x128xf32> to vector<64x1xf32>
    %40 = vector.extract_strided_slice %19 {offsets = [0, 126], sizes = [64, 1], strides = [1, 1]} : vector<64x128xf32> to vector<64x1xf32>
    %cst_38 = arith.constant 2.000000e+00 : f32
    %41 = vector.broadcast %cst_38 : f32 to vector<64x1xf32>
    %42 = arith.mulf %41, %40 : vector<64x1xf32>
    %43 = arith.addf %39, %42 : vector<64x1xf32>
    %44 = vector.shape_cast %38 : vector<1x128xi1> to vector<1x128xi1>
    %45 = vector.broadcast %44 : vector<1x128xi1> to vector<64x128xi1>
    %46 = vector.shape_cast %43 : vector<64x1xf32> to vector<64x1xf32>
    %47 = vector.broadcast %46 : vector<64x1xf32> to vector<64x128xf32>
    %48 = arith.select %45, %47, %36 : vector<64x128xi1>, vector<64x128xf32>
    %cst_39 = arith.constant 0.111111112 : f32
    %49 = vector.broadcast %cst_39 : f32 to vector<64x128xf32>
    %50 = arith.mulf %48, %49 : vector<64x128xf32>
    %51 = vector.extract_strided_slice %13 {offsets = [0, 0, 0], sizes = [4, 16, 128], strides = [1, 1, 1]} : vector<4x18x128xf32> to vector<4x16x128xf32>
    %52 = vector.extract_strided_slice %13 {offsets = [0, 1, 0], sizes = [4, 16, 128], strides = [1, 1, 1]} : vector<4x18x128xf32> to vector<4x16x128xf32>
    %53 = arith.addf %51, %52 : vector<4x16x128xf32>
    %54 = vector.extract_strided_slice %13 {offsets = [0, 2, 0], sizes = [4, 16, 128], strides = [1, 1, 1]} : vector<4x18x128xf32> to vector<4x16x128xf32>
    %55 = arith.addf %53, %54 : vector<4x16x128xf32>
    %56 = vector.shape_cast %55 : vector<4x16x128xf32> to vector<64x128xf32>
    %c1_i32_40 = arith.constant 1 : i32
    %57 = tpu.dynamic_rotate %56 by %c1_i32_40 dim 1 : vector<64x128xf32>, i32 -> vector<64x128xf32>
    %58 = arith.addf %56, %57 : vector<64x128xf32>
    %c127_i32_41 = arith.constant 127 : i32
    %59 = tpu.dynamic_rotate %56 by %c127_i32_41 dim 1 : vector<64x128xf32>, i32 -> vector<64x128xf32>
    %60 = arith.addf %58, %59 : vector<64x128xf32>
    %61 = tpu.iota {dimensions = array<i32: 1>} : vector<1x128xi32>
    %c0_i32_42 = arith.constant 0 : i32
    %62 = vector.broadcast %c0_i32_42 : i32 to vector<1x128xi32>
    %63 = arith.cmpi eq, %61, %62 : vector<1x128xi32>
    %64 = vector.extract_strided_slice %56 {offsets = [0, 0], sizes = [64, 1], strides = [1, 1]} : vector<64x128xf32> to vector<64x1xf32>
    %65 = vector.extract_strided_slice %56 {offsets = [0, 1], sizes = [64, 1], strides = [1, 1]} : vector<64x128xf32> to vector<64x1xf32>
    %cst_43 = arith.constant 2.000000e+00 : f32
    %66 = vector.broadcast %cst_43 : f32 to vector<64x1xf32>
    %67 = arith.mulf %66, %65 : vector<64x1xf32>
    %68 = arith.addf %64, %67 : vector<64x1xf32>
    %69 = vector.shape_cast %63 : vector<1x128xi1> to vector<1x128xi1>
    %70 = vector.broadcast %69 : vector<1x128xi1> to vector<64x128xi1>
    %71 = vector.shape_cast %68 : vector<64x1xf32> to vector<64x1xf32>
    %72 = vector.broadcast %71 : vector<64x1xf32> to vector<64x128xf32>
    %73 = arith.select %70, %72, %60 : vector<64x128xi1>, vector<64x128xf32>
    %c127_i32_44 = arith.constant 127 : i32
    %74 = vector.broadcast %c127_i32_44 : i32 to vector<1x128xi32>
    %75 = arith.cmpi eq, %61, %74 : vector<1x128xi32>
    %76 = vector.extract_strided_slice %56 {offsets = [0, 127], sizes = [64, 1], strides = [1, 1]} : vector<64x128xf32> to vector<64x1xf32>
    %77 = vector.extract_strided_slice %56 {offsets = [0, 126], sizes = [64, 1], strides = [1, 1]} : vector<64x128xf32> to vector<64x1xf32>
    %cst_45 = arith.constant 2.000000e+00 : f32
    %78 = vector.broadcast %cst_45 : f32 to vector<64x1xf32>
    %79 = arith.mulf %78, %77 : vector<64x1xf32>
    %80 = arith.addf %76, %79 : vector<64x1xf32>
    %81 = vector.shape_cast %75 : vector<1x128xi1> to vector<1x128xi1>
    %82 = vector.broadcast %81 : vector<1x128xi1> to vector<64x128xi1>
    %83 = vector.shape_cast %80 : vector<64x1xf32> to vector<64x1xf32>
    %84 = vector.broadcast %83 : vector<64x1xf32> to vector<64x128xf32>
    %85 = arith.select %82, %84, %73 : vector<64x128xi1>, vector<64x128xf32>
    %cst_46 = arith.constant 0.111111112 : f32
    %86 = vector.broadcast %cst_46 : f32 to vector<64x128xf32>
    %87 = arith.mulf %85, %86 : vector<64x128xf32>
    %88 = arith.mulf %12, %12 : vector<4x18x128xf32>
    %89 = vector.extract_strided_slice %88 {offsets = [0, 0, 0], sizes = [4, 16, 128], strides = [1, 1, 1]} : vector<4x18x128xf32> to vector<4x16x128xf32>
    %90 = vector.extract_strided_slice %88 {offsets = [0, 1, 0], sizes = [4, 16, 128], strides = [1, 1, 1]} : vector<4x18x128xf32> to vector<4x16x128xf32>
    %91 = arith.addf %89, %90 : vector<4x16x128xf32>
    %92 = vector.extract_strided_slice %88 {offsets = [0, 2, 0], sizes = [4, 16, 128], strides = [1, 1, 1]} : vector<4x18x128xf32> to vector<4x16x128xf32>
    %93 = arith.addf %91, %92 : vector<4x16x128xf32>
    %94 = vector.shape_cast %93 : vector<4x16x128xf32> to vector<64x128xf32>
    %c1_i32_47 = arith.constant 1 : i32
    %95 = tpu.dynamic_rotate %94 by %c1_i32_47 dim 1 : vector<64x128xf32>, i32 -> vector<64x128xf32>
    %96 = arith.addf %94, %95 : vector<64x128xf32>
    %c127_i32_48 = arith.constant 127 : i32
    %97 = tpu.dynamic_rotate %94 by %c127_i32_48 dim 1 : vector<64x128xf32>, i32 -> vector<64x128xf32>
    %98 = arith.addf %96, %97 : vector<64x128xf32>
    %99 = tpu.iota {dimensions = array<i32: 1>} : vector<1x128xi32>
    %c0_i32_49 = arith.constant 0 : i32
    %100 = vector.broadcast %c0_i32_49 : i32 to vector<1x128xi32>
    %101 = arith.cmpi eq, %99, %100 : vector<1x128xi32>
    %102 = vector.extract_strided_slice %94 {offsets = [0, 0], sizes = [64, 1], strides = [1, 1]} : vector<64x128xf32> to vector<64x1xf32>
    %103 = vector.extract_strided_slice %94 {offsets = [0, 1], sizes = [64, 1], strides = [1, 1]} : vector<64x128xf32> to vector<64x1xf32>
    %cst_50 = arith.constant 2.000000e+00 : f32
    %104 = vector.broadcast %cst_50 : f32 to vector<64x1xf32>
    %105 = arith.mulf %104, %103 : vector<64x1xf32>
    %106 = arith.addf %102, %105 : vector<64x1xf32>
    %107 = vector.shape_cast %101 : vector<1x128xi1> to vector<1x128xi1>
    %108 = vector.broadcast %107 : vector<1x128xi1> to vector<64x128xi1>
    %109 = vector.shape_cast %106 : vector<64x1xf32> to vector<64x1xf32>
    %110 = vector.broadcast %109 : vector<64x1xf32> to vector<64x128xf32>
    %111 = arith.select %108, %110, %98 : vector<64x128xi1>, vector<64x128xf32>
    %c127_i32_51 = arith.constant 127 : i32
    %112 = vector.broadcast %c127_i32_51 : i32 to vector<1x128xi32>
    %113 = arith.cmpi eq, %99, %112 : vector<1x128xi32>
    %114 = vector.extract_strided_slice %94 {offsets = [0, 127], sizes = [64, 1], strides = [1, 1]} : vector<64x128xf32> to vector<64x1xf32>
    %115 = vector.extract_strided_slice %94 {offsets = [0, 126], sizes = [64, 1], strides = [1, 1]} : vector<64x128xf32> to vector<64x1xf32>
    %cst_52 = arith.constant 2.000000e+00 : f32
    %116 = vector.broadcast %cst_52 : f32 to vector<64x1xf32>
    %117 = arith.mulf %116, %115 : vector<64x1xf32>
    %118 = arith.addf %114, %117 : vector<64x1xf32>
    %119 = vector.shape_cast %113 : vector<1x128xi1> to vector<1x128xi1>
    %120 = vector.broadcast %119 : vector<1x128xi1> to vector<64x128xi1>
    %121 = vector.shape_cast %118 : vector<64x1xf32> to vector<64x1xf32>
    %122 = vector.broadcast %121 : vector<64x1xf32> to vector<64x128xf32>
    %123 = arith.select %120, %122, %111 : vector<64x128xi1>, vector<64x128xf32>
    %cst_53 = arith.constant 0.111111112 : f32
    %124 = vector.broadcast %cst_53 : f32 to vector<64x128xf32>
    %125 = arith.mulf %123, %124 : vector<64x128xf32>
    %126 = arith.mulf %13, %13 : vector<4x18x128xf32>
    %127 = vector.extract_strided_slice %126 {offsets = [0, 0, 0], sizes = [4, 16, 128], strides = [1, 1, 1]} : vector<4x18x128xf32> to vector<4x16x128xf32>
    %128 = vector.extract_strided_slice %126 {offsets = [0, 1, 0], sizes = [4, 16, 128], strides = [1, 1, 1]} : vector<4x18x128xf32> to vector<4x16x128xf32>
    %129 = arith.addf %127, %128 : vector<4x16x128xf32>
    %130 = vector.extract_strided_slice %126 {offsets = [0, 2, 0], sizes = [4, 16, 128], strides = [1, 1, 1]} : vector<4x18x128xf32> to vector<4x16x128xf32>
    %131 = arith.addf %129, %130 : vector<4x16x128xf32>
    %132 = vector.shape_cast %131 : vector<4x16x128xf32> to vector<64x128xf32>
    %c1_i32_54 = arith.constant 1 : i32
    %133 = tpu.dynamic_rotate %132 by %c1_i32_54 dim 1 : vector<64x128xf32>, i32 -> vector<64x128xf32>
    %134 = arith.addf %132, %133 : vector<64x128xf32>
    %c127_i32_55 = arith.constant 127 : i32
    %135 = tpu.dynamic_rotate %132 by %c127_i32_55 dim 1 : vector<64x128xf32>, i32 -> vector<64x128xf32>
    %136 = arith.addf %134, %135 : vector<64x128xf32>
    %137 = tpu.iota {dimensions = array<i32: 1>} : vector<1x128xi32>
    %c0_i32_56 = arith.constant 0 : i32
    %138 = vector.broadcast %c0_i32_56 : i32 to vector<1x128xi32>
    %139 = arith.cmpi eq, %137, %138 : vector<1x128xi32>
    %140 = vector.extract_strided_slice %132 {offsets = [0, 0], sizes = [64, 1], strides = [1, 1]} : vector<64x128xf32> to vector<64x1xf32>
    %141 = vector.extract_strided_slice %132 {offsets = [0, 1], sizes = [64, 1], strides = [1, 1]} : vector<64x128xf32> to vector<64x1xf32>
    %cst_57 = arith.constant 2.000000e+00 : f32
    %142 = vector.broadcast %cst_57 : f32 to vector<64x1xf32>
    %143 = arith.mulf %142, %141 : vector<64x1xf32>
    %144 = arith.addf %140, %143 : vector<64x1xf32>
    %145 = vector.shape_cast %139 : vector<1x128xi1> to vector<1x128xi1>
    %146 = vector.broadcast %145 : vector<1x128xi1> to vector<64x128xi1>
    %147 = vector.shape_cast %144 : vector<64x1xf32> to vector<64x1xf32>
    %148 = vector.broadcast %147 : vector<64x1xf32> to vector<64x128xf32>
    %149 = arith.select %146, %148, %136 : vector<64x128xi1>, vector<64x128xf32>
    %c127_i32_58 = arith.constant 127 : i32
    %150 = vector.broadcast %c127_i32_58 : i32 to vector<1x128xi32>
    %151 = arith.cmpi eq, %137, %150 : vector<1x128xi32>
    %152 = vector.extract_strided_slice %132 {offsets = [0, 127], sizes = [64, 1], strides = [1, 1]} : vector<64x128xf32> to vector<64x1xf32>
    %153 = vector.extract_strided_slice %132 {offsets = [0, 126], sizes = [64, 1], strides = [1, 1]} : vector<64x128xf32> to vector<64x1xf32>
    %cst_59 = arith.constant 2.000000e+00 : f32
    %154 = vector.broadcast %cst_59 : f32 to vector<64x1xf32>
    %155 = arith.mulf %154, %153 : vector<64x1xf32>
    %156 = arith.addf %152, %155 : vector<64x1xf32>
    %157 = vector.shape_cast %151 : vector<1x128xi1> to vector<1x128xi1>
    %158 = vector.broadcast %157 : vector<1x128xi1> to vector<64x128xi1>
    %159 = vector.shape_cast %156 : vector<64x1xf32> to vector<64x1xf32>
    %160 = vector.broadcast %159 : vector<64x1xf32> to vector<64x128xf32>
    %161 = arith.select %158, %160, %149 : vector<64x128xi1>, vector<64x128xf32>
    %cst_60 = arith.constant 0.111111112 : f32
    %162 = vector.broadcast %cst_60 : f32 to vector<64x128xf32>
    %163 = arith.mulf %161, %162 : vector<64x128xf32>
    %164 = arith.mulf %12, %13 : vector<4x18x128xf32>
    %165 = vector.extract_strided_slice %164 {offsets = [0, 0, 0], sizes = [4, 16, 128], strides = [1, 1, 1]} : vector<4x18x128xf32> to vector<4x16x128xf32>
    %166 = vector.extract_strided_slice %164 {offsets = [0, 1, 0], sizes = [4, 16, 128], strides = [1, 1, 1]} : vector<4x18x128xf32> to vector<4x16x128xf32>
    %167 = arith.addf %165, %166 : vector<4x16x128xf32>
    %168 = vector.extract_strided_slice %164 {offsets = [0, 2, 0], sizes = [4, 16, 128], strides = [1, 1, 1]} : vector<4x18x128xf32> to vector<4x16x128xf32>
    %169 = arith.addf %167, %168 : vector<4x16x128xf32>
    %170 = vector.shape_cast %169 : vector<4x16x128xf32> to vector<64x128xf32>
    %c1_i32_61 = arith.constant 1 : i32
    %171 = tpu.dynamic_rotate %170 by %c1_i32_61 dim 1 : vector<64x128xf32>, i32 -> vector<64x128xf32>
    %172 = arith.addf %170, %171 : vector<64x128xf32>
    %c127_i32_62 = arith.constant 127 : i32
    %173 = tpu.dynamic_rotate %170 by %c127_i32_62 dim 1 : vector<64x128xf32>, i32 -> vector<64x128xf32>
    %174 = arith.addf %172, %173 : vector<64x128xf32>
    %175 = tpu.iota {dimensions = array<i32: 1>} : vector<1x128xi32>
    %c0_i32_63 = arith.constant 0 : i32
    %176 = vector.broadcast %c0_i32_63 : i32 to vector<1x128xi32>
    %177 = arith.cmpi eq, %175, %176 : vector<1x128xi32>
    %178 = vector.extract_strided_slice %170 {offsets = [0, 0], sizes = [64, 1], strides = [1, 1]} : vector<64x128xf32> to vector<64x1xf32>
    %179 = vector.extract_strided_slice %170 {offsets = [0, 1], sizes = [64, 1], strides = [1, 1]} : vector<64x128xf32> to vector<64x1xf32>
    %cst_64 = arith.constant 2.000000e+00 : f32
    %180 = vector.broadcast %cst_64 : f32 to vector<64x1xf32>
    %181 = arith.mulf %180, %179 : vector<64x1xf32>
    %182 = arith.addf %178, %181 : vector<64x1xf32>
    %183 = vector.shape_cast %177 : vector<1x128xi1> to vector<1x128xi1>
    %184 = vector.broadcast %183 : vector<1x128xi1> to vector<64x128xi1>
    %185 = vector.shape_cast %182 : vector<64x1xf32> to vector<64x1xf32>
    %186 = vector.broadcast %185 : vector<64x1xf32> to vector<64x128xf32>
    %187 = arith.select %184, %186, %174 : vector<64x128xi1>, vector<64x128xf32>
    %c127_i32_65 = arith.constant 127 : i32
    %188 = vector.broadcast %c127_i32_65 : i32 to vector<1x128xi32>
    %189 = arith.cmpi eq, %175, %188 : vector<1x128xi32>
    %190 = vector.extract_strided_slice %170 {offsets = [0, 127], sizes = [64, 1], strides = [1, 1]} : vector<64x128xf32> to vector<64x1xf32>
    %191 = vector.extract_strided_slice %170 {offsets = [0, 126], sizes = [64, 1], strides = [1, 1]} : vector<64x128xf32> to vector<64x1xf32>
    %cst_66 = arith.constant 2.000000e+00 : f32
    %192 = vector.broadcast %cst_66 : f32 to vector<64x1xf32>
    %193 = arith.mulf %192, %191 : vector<64x1xf32>
    %194 = arith.addf %190, %193 : vector<64x1xf32>
    %195 = vector.shape_cast %189 : vector<1x128xi1> to vector<1x128xi1>
    %196 = vector.broadcast %195 : vector<1x128xi1> to vector<64x128xi1>
    %197 = vector.shape_cast %194 : vector<64x1xf32> to vector<64x1xf32>
    %198 = vector.broadcast %197 : vector<64x1xf32> to vector<64x128xf32>
    %199 = arith.select %196, %198, %187 : vector<64x128xi1>, vector<64x128xf32>
    %cst_67 = arith.constant 0.111111112 : f32
    %200 = vector.broadcast %cst_67 : f32 to vector<64x128xf32>
    %201 = arith.mulf %199, %200 : vector<64x128xf32>
    %202 = arith.mulf %50, %50 : vector<64x128xf32>
    %203 = arith.mulf %87, %87 : vector<64x128xf32>
    %204 = arith.mulf %50, %87 : vector<64x128xf32>
    %205 = arith.subf %125, %202 : vector<64x128xf32>
    %206 = arith.subf %163, %203 : vector<64x128xf32>
    %207 = arith.subf %201, %204 : vector<64x128xf32>
    %cst_68 = arith.constant 2.000000e+00 : f32
    %208 = vector.broadcast %cst_68 : f32 to vector<64x128xf32>
    %209 = arith.mulf %208, %204 : vector<64x128xf32>
    %cst_69 = arith.constant 9.99999974E-5 : f32
    %210 = vector.broadcast %cst_69 : f32 to vector<64x128xf32>
    %211 = arith.addf %209, %210 : vector<64x128xf32>
    %cst_70 = arith.constant 2.000000e+00 : f32
    %212 = vector.broadcast %cst_70 : f32 to vector<64x128xf32>
    %213 = arith.mulf %212, %207 : vector<64x128xf32>
    %cst_71 = arith.constant 8.99999984E-4 : f32
    %214 = vector.broadcast %cst_71 : f32 to vector<64x128xf32>
    %215 = arith.addf %213, %214 : vector<64x128xf32>
    %216 = arith.mulf %211, %215 : vector<64x128xf32>
    %217 = arith.addf %202, %203 : vector<64x128xf32>
    %cst_72 = arith.constant 9.99999974E-5 : f32
    %218 = vector.broadcast %cst_72 : f32 to vector<64x128xf32>
    %219 = arith.addf %217, %218 : vector<64x128xf32>
    %220 = arith.addf %205, %206 : vector<64x128xf32>
    %cst_73 = arith.constant 8.99999984E-4 : f32
    %221 = vector.broadcast %cst_73 : f32 to vector<64x128xf32>
    %222 = arith.addf %220, %221 : vector<64x128xf32>
    %223 = arith.mulf %219, %222 : vector<64x128xf32>
    %224 = arith.divf %216, %223 : vector<64x128xf32>
    %cst_74 = arith.constant 1.000000e+00 : f32
    %225 = vector.broadcast %cst_74 : f32 to vector<64x128xf32>
    %226 = arith.subf %225, %224 : vector<64x128xf32>
    %cst_75 = arith.constant 5.000000e-01 : f32
    %227 = vector.broadcast %cst_75 : f32 to vector<64x128xf32>
    %228 = arith.mulf %226, %227 : vector<64x128xf32>
    %cst_76 = arith.constant 0.000000e+00 : f32
    %cst_77 = arith.constant 1.000000e+00 : f32
    %229 = vector.broadcast %cst_76 : f32 to vector<64x128xf32>
    %230 = arith.maximumf %229, %228 : vector<64x128xf32>
    %231 = vector.broadcast %cst_77 : f32 to vector<64x128xf32>
    %232 = arith.minimumf %231, %230 : vector<64x128xf32>
    %233 = vector.shape_cast %232 : vector<64x128xf32> to vector<4x16x128xf32>
    %c0_78 = arith.constant 0 : index
    %c0_79 = arith.constant 0 : index
    %c0_80 = arith.constant 0 : index
    %234 = vector.load %arg3[%c0_78, %c0_79, %c0_80] : memref<4x16x128xf32, #tpu.memory_space<vmem>>, vector<4x16x128xf32>
    tpu.vector_store %arg3[%c0_78, %c0_79, %c0_80], %233 {strides = array<i32>} : memref<4x16x128xf32, #tpu.memory_space<vmem>>, vector<4x16x128xf32>,
    return
  }
  func.func @transform_0(%arg0: i32) -> (i32, i32, i32) {
    %c0_i32 = arith.constant 0 : i32
    %c0_i32_0 = arith.constant 0 : i32
    %c0_i32_1 = arith.constant 0 : i32
    return %arg0, %c0_i32, %c0_i32_0 : i32, i32, i32
  }
  func.func @transform_1(%arg0: i32) -> (i32, i32, i32) {
    %c0_i32 = arith.constant 0 : i32
    %c0_i32_0 = arith.constant 0 : i32
    %c0_i32_1 = arith.constant 0 : i32
    return %arg0, %c0_i32, %c0_i32_0 : i32, i32, i32
  }
  func.func @transform_2(%arg0: i32) -> (i32, i32, i32) {
    %c0_i32 = arith.constant 0 : i32
    %c0_i32_0 = arith.constant 0 : i32
    %c0_i32_1 = arith.constant 0 : i32
    return %arg0, %c0_i32, %c0_i32_0 : i32, i32, i32
  }
}

</mosaic_0001>

<llo_original>
// kernel: tpu_custom_call.1
$region0: #{tpu_custom_call.1}
  #allocation0 [shape = 'u32[]', space=smem, size = 0x4, offset = 0x4, fixed_abs, tag = 'smem constant byte address 0x4 - core index']
  #allocation1 [shape = 'u32[144,128]{1,0:T(1,128)}', space=vmem, size = 0x12000, scoped, tag = 'internal scratch']
  #allocation2 [shape = 'f32[4,18,128]{2,1,0:T(8,128)}', space=vmem, size = 0xc000, scoped, tag = 'scratch operand']
  #allocation3 [shape = 'f32[4,18,128]{2,1,0:T(8,128)}', space=vmem, size = 0xc000, scoped, tag = 'scratch operand']
  %s0 = inlined_call_operand.hbm [shape: f32[8,16,128], index: 0, kind: input, shape index: {}]
  %s1 = inlined_call_operand.hbm [shape: f32[8,16,128], index: 1, kind: input, shape index: {}]
  %s2 = inlined_call_operand.hbm [shape: f32[8,16,128], index: 2, kind: output, shape index: {}]
  %s3 = sld [smem:[#allocation0]]
  $region49: #{tpu_custom_call.1} parent=0
    _
  %s5 = ssub.s32 1, %s3
  %s6 = scalar_select 0, %s5, %s3
  $region1: #{tpu_custom_call.1} parent=0
    #allocation4 [shape = 'u8[65536]{0}', space=vmem, size = 0x10000, scoped, tag = 'input window, operand 0']
    #allocation5 [shape = 's32[2]{0}', space=sflag, size = 0x8, scoped, tag = 'scoped memory for tpu_custom_call.1']
    #allocation6 [shape = 's32[2]{0}', space=sflag, size = 0x8, scoped, tag = 'scoped memory for tpu_custom_call.1']
    #allocation7 [shape = 'u8[65536]{0}', space=vmem, size = 0x10000, scoped, tag = 'input window, operand 1']
    #allocation8 [shape = 's32[2]{0}', space=sflag, size = 0x8, scoped, tag = 'scoped memory for tpu_custom_call.1']
    #allocation9 [shape = 'u8[65536]{0}', space=vmem, size = 0x10000, scoped, tag = 'output window, operand 0']
    %7 = vsyncpa [#allocation5], 0
    %s8 = scalar_lea.sflag [#allocation5], 1
    %9 = vsyncpa %s8, 0
    %10 = vsyncpa [#allocation8], 0
    %s11 = scalar_lea.sflag [#allocation8], 1
    %12 = vsyncpa %s11, 0
    %13 = vsyncpa [#allocation6], 0
    %s14 = scalar_lea.sflag [#allocation6], 1
    %15 = vsyncpa %s14, 0
    loop: start=0, step=1, limit=4
    $region2: #{tpu_custom_call.1} parent=1 // loop_pre_header
      _
    $region3: #{tpu_custom_call.1} parent=1 // loop_header
      %s17 = sphi 0, %s21
      %p18 = scmp.ge.s32.totalorder %s17, 4
      %s27 = sphi 0, %s29
      %s30 = sphi 0, %s27
      %s31 = sphi 0, %s30
      %s47 = sphi 0, %s31
      %s53 = sphi 0, %s55
      %s56 = sphi 0, %s53
      %s57 = sphi 0, %s56
      %s73 = sphi 0, %s57
      %s79 = sphi 0, %s81
      %s82 = sphi 0, %s79
      %s83 = sphi 0, %s82
      %s99 = sphi 0, %s83
    $region4: #{tpu_custom_call.1} parent=1 // loop_header_branch
      %20 = sbr.rel (%p18) target = $region8
    $region5: #{tpu_custom_call.1} parent=1 // loop_body
      %s22 = ssub.s32 %s17, 1
      %s23 = ssub.s32 %s17, 2
      %s24 = sadd.s32 %s17, 1
      %s25 = ssub.s32 %s17, %s24
      %p26 = scmp.eq.s32.totalorder %s25, 0
      %s28 = sadd.s32 %s27, 1
      %s29 = scalar_select %p26, %s27, %s28
      %p32 = pneg %p26
      %p33 = scmp.eq.s32.totalorder %s17, 1
      %p34 = por %p32, %p33
      %p35 = scmp.ne.s32.totalorder %s27, %s30
      %p36 = scmp.eq.s32.totalorder %s17, 0
      %p37 = por %p35, %p36
      %p38 = scmp.ne.s32.totalorder %s27, %s30
      %p39 = scmp.eq.s32.totalorder %s22, 1
      %p40 = por %p38, %p39
      %p41 = scmp.ne.s32.totalorder %s30, %s31
      %p42 = scmp.eq.s32.totalorder %s22, 0
      %p43 = por %p41, %p42
      %p44 = scmp.ne.s32.totalorder %s30, %s31
      %p45 = scmp.eq.s32.totalorder %s23, 1
      %p46 = por %p44, %p45
      %p48 = scmp.ne.s32.totalorder %s31, %s47
      %p49 = scmp.eq.s32.totalorder %s23, 0
      %p50 = por %p48, %p49
      %s51 = ssub.s32 %s17, %s24
      %p52 = scmp.eq.s32.totalorder %s51, 0
      %s54 = sadd.s32 %s53, 1
      %s55 = scalar_select %p52, %s53, %s54
      %p58 = pneg %p52
      %p59 = scmp.eq.s32.totalorder %s17, 1
      %p60 = por %p58, %p59
      %p61 = scmp.ne.s32.totalorder %s53, %s56
      %p62 = scmp.eq.s32.totalorder %s17, 0
      %p63 = por %p61, %p62
      %p64 = scmp.ne.s32.totalorder %s53, %s56
      %p65 = scmp.eq.s32.totalorder %s22, 1
      %p66 = por %p64, %p65
      %p67 = scmp.ne.s32.totalorder %s56, %s57
      %p68 = scmp.eq.s32.totalorder %s22, 0
      %p69 = por %p67, %p68
      %p70 = scmp.ne.s32.totalorder %s56, %s57
      %p71 = scmp.eq.s32.totalorder %s23, 1
      %p72 = por %p70, %p71
      %p74 = scmp.ne.s32.totalorder %s57, %s73
      %p75 = scmp.eq.s32.totalorder %s23, 0
      %p76 = por %p74, %p75
      %s77 = ssub.s32 %s17, %s24
      %p78 = scmp.eq.s32.totalorder %s77, 0
      %s80 = sadd.s32 %s79, 1
      %s81 = scalar_select %p78, %s79, %s80
      %p84 = pneg %p78
      %p85 = scmp.eq.s32.totalorder %s17, 1
      %p86 = por %p84, %p85
      %p87 = scmp.ne.s32.totalorder %s79, %s82
      %p88 = scmp.eq.s32.totalorder %s17, 0
      %p89 = por %p87, %p88
      %p90 = scmp.ne.s32.totalorder %s79, %s82
      %p91 = scmp.eq.s32.totalorder %s22, 1
      %p92 = por %p90, %p91
      %p93 = scmp.ne.s32.totalorder %s82, %s83
      %p94 = scmp.eq.s32.totalorder %s22, 0
      %p95 = por %p93, %p94
      %p96 = scmp.ne.s32.totalorder %s82, %s83
      %p97 = scmp.eq.s32.totalorder %s23, 1
      %p98 = por %p96, %p97
      %p100 = scmp.ne.s32.totalorder %s83, %s99
      %p101 = scmp.eq.s32.totalorder %s23, 0
      %p102 = por %p100, %p101
      %p103 = scmp.le.s32.totalorder 1, %s17
      %p104 = scmp.lt.s32.totalorder %s17, 3
      %p105 = pnand %p103, %p104
      %p106 = pneg %p105
      // Predicated region
      $region9: #{tpu_custom_call.1} parent=5 // pred_check
        _
      $region10: #{tpu_custom_call.1} parent=5 // pred_check_branch
        %108 = sbr.rel (%p105) target = $region12
      $region11: #{tpu_custom_call.1} parent=5 // pred_region
        %s109 = ssub.s32 %s17, 1
      $region12: #{tpu_custom_call.1} parent=5 // pred_fallthru
        _
      %p110 = scmp.lt.s32.totalorder %s17, 2
      // Predicated region
      $region13: #{tpu_custom_call.1} parent=5 // pred_check
        %p111 = pneg %p110
      $region14: #{tpu_custom_call.1} parent=5 // pred_check_branch
        %113 = sbr.rel (%p111) target = $region16
      $region15: #{tpu_custom_call.1} parent=5 // pred_region
        // Predicated region
        $region17: #{tpu_custom_call.1} parent=15 // pred_check
          %p114 = pneg %p37
        $region18: #{tpu_custom_call.1} parent=15 // pred_check_branch
          %116 = sbr.rel (%p114) target = $region20
        $region19: #{tpu_custom_call.1} parent=15 // pred_region
          %s117 = sand.u32 %s27, 1
          %s118 = scalar_lea.sflag [#allocation5], %s117
          %s119 = sand.u32 %s27, 1
          %s120 = smul.addr %s119, 64
          %s121 = scalar_lea.vmem [#allocation4], %s120
          %s122 = smul.u32 4, %s17
          %s124 = ssub.s32 1024, 1024
          %125 = vsyncadd %s118, %s124
          %s126 = smul.addr %s122, 2
          %s127 = smul.addr %s126, 128
          %s128 = scalar_lea.hbm %s0, %s127
          %s129 = sshll.u32 %s121, 4
          %s130 = int_to_ptr.vmem [resolvable:$true] %s129
          %135 = dma.hbm_to_vmem [thread:$0]  %s128, 1024, %s130, %s118, 128, 128, 8
        $region20: #{tpu_custom_call.1} parent=15 // pred_fallthru
          _
        // Predicated region
        $region21: #{tpu_custom_call.1} parent=15 // pred_check
          %p136 = pneg %p63
        $region22: #{tpu_custom_call.1} parent=15 // pred_check_branch
          %138 = sbr.rel (%p136) target = $region24
        $region23: #{tpu_custom_call.1} parent=15 // pred_region
          %s139 = sand.u32 %s53, 1
          %s140 = scalar_lea.sflag [#allocation8], %s139
          %s141 = sand.u32 %s53, 1
          %s142 = smul.addr %s141, 64
          %s143 = scalar_lea.vmem [#allocation7], %s142
          %s144 = smul.u32 4, %s17
          %s146 = ssub.s32 1024, 1024
          %147 = vsyncadd %s140, %s146
          %s148 = smul.addr %s144, 2
          %s149 = smul.addr %s148, 128
          %s150 = scalar_lea.hbm %s1, %s149
          %s151 = sshll.u32 %s143, 4
          %s152 = int_to_ptr.vmem [resolvable:$true] %s151
          %157 = dma.hbm_to_vmem [thread:$0]  %s150, 1024, %s152, %s140, 128, 128, 8
        $region24: #{tpu_custom_call.1} parent=15 // pred_fallthru
          _
      $region16: #{tpu_custom_call.1} parent=5 // pred_fallthru
        _
      %p158 = scmp.le.s32.totalorder 1, %s17
      %p159 = scmp.lt.s32.totalorder %s17, 3
      %p160 = pnand %p158, %p159
      %p161 = pneg %p160
      // Predicated region
      $region25: #{tpu_custom_call.1} parent=5 // pred_check
        _
      $region26: #{tpu_custom_call.1} parent=5 // pred_check_branch
        %163 = sbr.rel (%p160) target = $region28
      $region27: #{tpu_custom_call.1} parent=5 // pred_region
        %s164 = ssub.s32 %s17, 1
        %s165 = sand.u32 %s30, 1
        %s166 = scalar_lea.sflag [#allocation5], %s165
        %s167 = sand.u32 %s30, 1
        %s168 = smul.addr %s167, 64
        %s169 = scalar_lea.vmem [#allocation4], %s168
        // Predicated region
        $region29: #{tpu_custom_call.1} parent=27 // pred_check
          %p170 = pneg %p43
        $region30: #{tpu_custom_call.1} parent=27 // pred_check_branch
          %172 = sbr.rel (%p170) target = $region32
        $region31: #{tpu_custom_call.1} parent=27 // pred_region
          %173 = dma.done %s166, 1024
        $region32: #{tpu_custom_call.1} parent=27 // pred_fallthru
          _
        %s174 = sand.u32 %s56, 1
        %s175 = scalar_lea.sflag [#allocation8], %s174
        %s176 = sand.u32 %s56, 1
        %s177 = smul.addr %s176, 64
        %s178 = scalar_lea.vmem [#allocation7], %s177
        // Predicated region
        $region33: #{tpu_custom_call.1} parent=27 // pred_check
          %p179 = pneg %p69
        $region34: #{tpu_custom_call.1} parent=27 // pred_check_branch
          %181 = sbr.rel (%p179) target = $region36
        $region35: #{tpu_custom_call.1} parent=27 // pred_region
          %182 = dma.done %s175, 1024
        $region36: #{tpu_custom_call.1} parent=27 // pred_fallthru
          _
        %s183 = sand.u32 %s30, 1
        %s184 = scalar_lea.sflag [#allocation5], %s183
        %s185 = sand.u32 %s30, 1
        %s186 = smul.addr %s185, 64
        %s187 = scalar_lea.vmem [#allocation4], %s186
        %p188 = pneg %p43
        %p189 = pneg %p40
        %s190 = sand.u32 %s56, 1
        %s191 = scalar_lea.sflag [#allocation8], %s190
        %s192 = sand.u32 %s56, 1
        %s193 = smul.addr %s192, 64
        %s194 = scalar_lea.vmem [#allocation7], %s193
        %p195 = pneg %p69
        %p196 = pneg %p66
        %p197 = pneg %p95
        %p198 = pneg %p92
        %s199 = sand.u32 %s82, 1
        %s200 = scalar_lea.sflag [#allocation6], %s199
        %s201 = sand.u32 %s82, 1
        %s202 = smul.addr %s201, 64
        %s203 = scalar_lea.vmem [#allocation9], %s202
        %s204 = smul.u32 4, %s22
        %s205 = smul.u32 4, %s22
        %s206 = smul.u32 4, %s22
        %v207 = vld [vmem:[%s169] sm:$0xff]
        %v208 = vld [vmem:[%s169 + $0x8] sm:$0xff]
        %v209 = vld [vmem:[%s169 + $0x10] sm:$0xff]
        %v210 = vld [vmem:[%s169 + $0x18] sm:$0xff]
        %v211 = vld [vmem:[%s169 + $0x20] sm:$0xff]
        %v212 = vld [vmem:[%s169 + $0x28] sm:$0xff]
        %v213 = vld [vmem:[%s169 + $0x30] sm:$0xff]
        %v214 = vld [vmem:[%s169 + $0x38] sm:$0xff]
        %215 = vst [vmem:[#allocation2 + $0x1] sm:$0xff] %v207
        %216 = vst [vmem:[#allocation2 + $0x9] sm:$0xff] %v208
        %217 = vst [vmem:[#allocation2 + $0x19] sm:$0xff] %v209
        %218 = vst [vmem:[#allocation2 + $0x21] sm:$0xff] %v210
        %219 = vst [vmem:[#allocation2 + $0x31] sm:$0xff] %v211
        %220 = vst [vmem:[#allocation2 + $0x39] sm:$0xff] %v212
        %221 = vst [vmem:[#allocation2 + $0x49] sm:$0xff] %v213
        %222 = vst [vmem:[#allocation2 + $0x51] sm:$0xff] %v214
        %v223 = vld [vmem:[%s178] sm:$0xff]
        %v224 = vld [vmem:[%s178 + $0x8] sm:$0xff]
        %v225 = vld [vmem:[%s178 + $0x10] sm:$0xff]
        %v226 = vld [vmem:[%s178 + $0x18] sm:$0xff]
        %v227 = vld [vmem:[%s178 + $0x20] sm:$0xff]
        %v228 = vld [vmem:[%s178 + $0x28] sm:$0xff]
        %v229 = vld [vmem:[%s178 + $0x30] sm:$0xff]
        %v230 = vld [vmem:[%s178 + $0x38] sm:$0xff]
        %231 = vst [vmem:[#allocation3 + $0x1] sm:$0xff] %v223
        %232 = vst [vmem:[#allocation3 + $0x9] sm:$0xff] %v224
        %233 = vst [vmem:[#allocation3 + $0x19] sm:$0xff] %v225
        %234 = vst [vmem:[#allocation3 + $0x21] sm:$0xff] %v226
        %235 = vst [vmem:[#allocation3 + $0x31] sm:$0xff] %v227
        %236 = vst [vmem:[#allocation3 + $0x39] sm:$0xff] %v228
        %237 = vst [vmem:[#allocation3 + $0x49] sm:$0xff] %v229
        %238 = vst [vmem:[#allocation3 + $0x51] sm:$0xff] %v230
        %v239 = vld [vmem:[#allocation2 + $0x2] sm:$0x1]
        %v240 = vld [vmem:[#allocation2 + $0x1a] sm:$0x1]
        %v241 = vld [vmem:[#allocation2 + $0x32] sm:$0x1]
        %v242 = vld [vmem:[#allocation2 + $0x4a] sm:$0x1]
        %243 = vst [vmem:[#allocation2] sm:$0x1] %v239
        %244 = vst [vmem:[#allocation2 + $0x18] sm:$0x1] %v240
        %245 = vst [vmem:[#allocation2 + $0x30] sm:$0x1] %v241
        %246 = vst [vmem:[#allocation2 + $0x48] sm:$0x1] %v242
        %v247 = vld [vmem:[#allocation2 + $0xf] sm:$0x1]
        %v248 = vld [vmem:[#allocation2 + $0x27] sm:$0x1]
        %v249 = vld [vmem:[#allocation2 + $0x3f] sm:$0x1]
        %v250 = vld [vmem:[#allocation2 + $0x57] sm:$0x1]
        %251 = vst [vmem:[#allocation2 + $0x11] sm:$0x1] %v247
        %252 = vst [vmem:[#allocation2 + $0x29] sm:$0x1] %v248
        %253 = vst [vmem:[#allocation2 + $0x41] sm:$0x1] %v249
        %254 = vst [vmem:[#allocation2 + $0x59] sm:$0x1] %v250
        %v255 = vld [vmem:[#allocation3 + $0x2] sm:$0x1]
        %v256 = vld [vmem:[#allocation3 + $0x1a] sm:$0x1]
        %v257 = vld [vmem:[#allocation3 + $0x32] sm:$0x1]
        %v258 = vld [vmem:[#allocation3 + $0x4a] sm:$0x1]
        %259 = vst [vmem:[#allocation3] sm:$0x1] %v255
        %260 = vst [vmem:[#allocation3 + $0x18] sm:$0x1] %v256
        %261 = vst [vmem:[#allocation3 + $0x30] sm:$0x1] %v257
        %262 = vst [vmem:[#allocation3 + $0x48] sm:$0x1] %v258
        %v263 = vld [vmem:[#allocation3 + $0xf] sm:$0x1]
        %v264 = vld [vmem:[#allocation3 + $0x27] sm:$0x1]
        %v265 = vld [vmem:[#allocation3 + $0x3f] sm:$0x1]
        %v266 = vld [vmem:[#allocation3 + $0x57] sm:$0x1]
        %267 = vst [vmem:[#allocation3 + $0x11] sm:$0x1] %v263
        %268 = vst [vmem:[#allocation3 + $0x29] sm:$0x1] %v264
        %269 = vst [vmem:[#allocation3 + $0x41] sm:$0x1] %v265
        %270 = vst [vmem:[#allocation3 + $0x59] sm:$0x1] %v266
        %v271 = vld [vmem:[#allocation2] sm:$0xff]
        %v272 = vld [vmem:[#allocation2 + $0x8] sm:$0xff]
        %v273 = vld [vmem:[#allocation2 + $0x10] sm:$0x3]
        %v274 = vld [vmem:[#allocation2 + $0x18] sm:$0xff]
        %v275 = vld [vmem:[#allocation2 + $0x20] sm:$0xff]
        %v276 = vld [vmem:[#allocation2 + $0x28] sm:$0x3]
        %v277 = vld [vmem:[#allocation2 + $0x30] sm:$0xff]
        %v278 = vld [vmem:[#allocation2 + $0x38] sm:$0xff]
        %v279 = vld [vmem:[#allocation2 + $0x40] sm:$0x3]
        %v280 = vld [vmem:[#allocation2 + $0x48] sm:$0xff]
        %v281 = vld [vmem:[#allocation2 + $0x50] sm:$0xff]
        %v282 = vld [vmem:[#allocation2 + $0x58] sm:$0x3]
        %v283 = vld [vmem:[#allocation3] sm:$0xff]
        %v284 = vld [vmem:[#allocation3 + $0x8] sm:$0xff]
        %v285 = vld [vmem:[#allocation3 + $0x10] sm:$0x3]
        %v286 = vld [vmem:[#allocation3 + $0x18] sm:$0xff]
        %v287 = vld [vmem:[#allocation3 + $0x20] sm:$0xff]
        %v288 = vld [vmem:[#allocation3 + $0x28] sm:$0x3]
        %v289 = vld [vmem:[#allocation3 + $0x30] sm:$0xff]
        %v290 = vld [vmem:[#allocation3 + $0x38] sm:$0xff]
        %v291 = vld [vmem:[#allocation3 + $0x40] sm:$0x3]
        %v292 = vld [vmem:[#allocation3 + $0x48] sm:$0xff]
        %v293 = vld [vmem:[#allocation3 + $0x50] sm:$0xff]
        %v294 = vld [vmem:[#allocation3 + $0x58] sm:$0x3]
        %vm307 = vcmask 1046528
        %v308 = vrot.slane %v271, 1
        %v309 = vrot.slane %v272, 1
        %v310 = vsel %vm307, %v308, %v309
        %v311 = vrot.slane %v273, 1
        %v312 = vsel %vm307, %v309, %v311
        %v313 = vrot.slane %v274, 1
        %v314 = vrot.slane %v275, 1
        %v315 = vsel %vm307, %v313, %v314
        %v316 = vrot.slane %v276, 1
        %v317 = vsel %vm307, %v314, %v316
        %v318 = vrot.slane %v277, 1
        %v319 = vrot.slane %v278, 1
        %v320 = vsel %vm307, %v318, %v319
        %v321 = vrot.slane %v279, 1
        %v322 = vsel %vm307, %v319, %v321
        %v323 = vrot.slane %v280, 1
        %v324 = vrot.slane %v281, 1
        %v325 = vsel %vm307, %v323, %v324
        %v326 = vrot.slane %v282, 1
        %v327 = vsel %vm307, %v324, %v326
        %v336 = vadd.f32 %v271, %v310
        %v337 = vadd.f32 %v272, %v312
        %v338 = vadd.f32 %v274, %v315
        %v339 = vadd.f32 %v275, %v317
        %v340 = vadd.f32 %v277, %v320
        %v341 = vadd.f32 %v278, %v322
        %v342 = vadd.f32 %v280, %v325
        %v343 = vadd.f32 %v281, %v327
        %vm344 = vcmask 1045504
        %v345 = vrot.slane %v271, 2
        %v346 = vrot.slane %v272, 2
        %v347 = vsel %vm344, %v345, %v346
        %v348 = vrot.slane %v273, 2
        %v349 = vsel %vm344, %v346, %v348
        %v350 = vrot.slane %v274, 2
        %v351 = vrot.slane %v275, 2
        %v352 = vsel %vm344, %v350, %v351
        %v353 = vrot.slane %v276, 2
        %v354 = vsel %vm344, %v351, %v353
        %v355 = vrot.slane %v277, 2
        %v356 = vrot.slane %v278, 2
        %v357 = vsel %vm344, %v355, %v356
        %v358 = vrot.slane %v279, 2
        %v359 = vsel %vm344, %v356, %v358
        %v360 = vrot.slane %v280, 2
        %v361 = vrot.slane %v281, 2
        %v362 = vsel %vm344, %v360, %v361
        %v363 = vrot.slane %v282, 2
        %v364 = vsel %vm344, %v361, %v363
        %v373 = vadd.f32 %v336, %v347
        %v374 = vadd.f32 %v337, %v349
        %v375 = vadd.f32 %v338, %v352
        %v376 = vadd.f32 %v339, %v354
        %v377 = vadd.f32 %v340, %v357
        %v378 = vadd.f32 %v341, %v359
        %v379 = vadd.f32 %v342, %v362
        %v380 = vadd.f32 %v343, %v364
        %381 = vrot.lane.b32.xlu0 %v373, 1
        %v382 = vpop.permute.xlu0 %381
        %383 = vrot.lane.b32.xlu0 %v374, 1
        %v384 = vpop.permute.xlu0 %383
        %385 = vrot.lane.b32.xlu0 %v375, 1
        %v386 = vpop.permute.xlu0 %385
        %387 = vrot.lane.b32.xlu0 %v376, 1
        %v388 = vpop.permute.xlu0 %387
        %389 = vrot.lane.b32.xlu0 %v377, 1
        %v390 = vpop.permute.xlu0 %389
        %391 = vrot.lane.b32.xlu0 %v378, 1
        %v392 = vpop.permute.xlu0 %391
        %393 = vrot.lane.b32.xlu0 %v379, 1
        %v394 = vpop.permute.xlu0 %393
        %395 = vrot.lane.b32.xlu0 %v380, 1
        %v396 = vpop.permute.xlu0 %395
        %v397 = vadd.f32 %v373, %v382
        %v398 = vadd.f32 %v374, %v384
        %v399 = vadd.f32 %v375, %v386
        %v400 = vadd.f32 %v376, %v388
        %v401 = vadd.f32 %v377, %v390
        %v402 = vadd.f32 %v378, %v392
        %v403 = vadd.f32 %v379, %v394
        %v404 = vadd.f32 %v380, %v396
        %405 = vrot.lane.b32.xlu0 %v373, 127
        %v406 = vpop.permute.xlu0 %405
        %407 = vrot.lane.b32.xlu0 %v374, 127
        %v408 = vpop.permute.xlu0 %407
        %409 = vrot.lane.b32.xlu0 %v375, 127
        %v410 = vpop.permute.xlu0 %409
        %411 = vrot.lane.b32.xlu0 %v376, 127
        %v412 = vpop.permute.xlu0 %411
        %413 = vrot.lane.b32.xlu0 %v377, 127
        %v414 = vpop.permute.xlu0 %413
        %415 = vrot.lane.b32.xlu0 %v378, 127
        %v416 = vpop.permute.xlu0 %415
        %417 = vrot.lane.b32.xlu0 %v379, 127
        %v418 = vpop.permute.xlu0 %417
        %419 = vrot.lane.b32.xlu0 %v380, 127
        %v420 = vpop.permute.xlu0 %419
        %v421 = vadd.f32 %v397, %v406
        %v422 = vadd.f32 %v398, %v408
        %v423 = vadd.f32 %v399, %v410
        %v424 = vadd.f32 %v400, %v412
        %v425 = vadd.f32 %v401, %v414
        %v426 = vadd.f32 %v402, %v416
        %v427 = vadd.f32 %v403, %v418
        %v428 = vadd.f32 %v404, %v420
        %v429 = vlaneseq
        %v430 = vand.u32 %v429, 127
        %vm431 = vcmp.eq.s32.totalorder %v430, 0
        %v432 = vmul.f32 %v373, 2.0
        %v433 = vmul.f32 %v374, 2.0
        %v434 = vmul.f32 %v375, 2.0
        %v435 = vmul.f32 %v376, 2.0
        %v436 = vmul.f32 %v377, 2.0
        %v437 = vmul.f32 %v378, 2.0
        %v438 = vmul.f32 %v379, 2.0
        %v439 = vmul.f32 %v380, 2.0
        %448 = vrot.lane.b32.xlu0 %v432, 127
        %v449 = vpop.permute.xlu0 %448
        %450 = vrot.lane.b32.xlu0 %v433, 127
        %v451 = vpop.permute.xlu0 %450
        %452 = vrot.lane.b32.xlu0 %v434, 127
        %v453 = vpop.permute.xlu0 %452
        %454 = vrot.lane.b32.xlu0 %v435, 127
        %v455 = vpop.permute.xlu0 %454
        %456 = vrot.lane.b32.xlu0 %v436, 127
        %v457 = vpop.permute.xlu0 %456
        %458 = vrot.lane.b32.xlu0 %v437, 127
        %v459 = vpop.permute.xlu0 %458
        %460 = vrot.lane.b32.xlu0 %v438, 127
        %v461 = vpop.permute.xlu0 %460
        %462 = vrot.lane.b32.xlu0 %v439, 127
        %v463 = vpop.permute.xlu0 %462
        %v472 = vadd.f32 %v373, %v449
        %v473 = vadd.f32 %v374, %v451
        %v474 = vadd.f32 %v375, %v453
        %v475 = vadd.f32 %v376, %v455
        %v476 = vadd.f32 %v377, %v457
        %v477 = vadd.f32 %v378, %v459
        %v478 = vadd.f32 %v379, %v461
        %v479 = vadd.f32 %v380, %v463
        %v480 = vsel %vm431, 1, 0
        %vm481 = vcmp.eq.s32.totalorder %v480, 1
        %483 = vset.pattern.permute.xlu0 0
        %484 = vperm.xlu0 %483, %v472
        %v485 = vpop.permute.xlu0 %484
        %488 = vset.pattern.permute.xlu0 0
        %489 = vperm.xlu0 %488, %v473
        %v490 = vpop.permute.xlu0 %489
        %493 = vset.pattern.permute.xlu0 0
        %494 = vperm.xlu0 %493, %v474
        %v495 = vpop.permute.xlu0 %494
        %498 = vset.pattern.permute.xlu0 0
        %499 = vperm.xlu0 %498, %v475
        %v500 = vpop.permute.xlu0 %499
        %503 = vset.pattern.permute.xlu0 0
        %504 = vperm.xlu0 %503, %v476
        %v505 = vpop.permute.xlu0 %504
        %508 = vset.pattern.permute.xlu0 0
        %509 = vperm.xlu0 %508, %v477
        %v510 = vpop.permute.xlu0 %509
        %513 = vset.pattern.permute.xlu0 0
        %514 = vperm.xlu0 %513, %v478
        %v515 = vpop.permute.xlu0 %514
        %518 = vset.pattern.permute.xlu0 0
        %519 = vperm.xlu0 %518, %v479
        %v520 = vpop.permute.xlu0 %519
        %v522 = vsel %vm481, %v485, %v421
        %v523 = vsel %vm481, %v490, %v422
        %v524 = vsel %vm481, %v495, %v423
        %v525 = vsel %vm481, %v500, %v424
        %v526 = vsel %vm481, %v505, %v425
        %v527 = vsel %vm481, %v510, %v426
        %v528 = vsel %vm481, %v515, %v427
        %v529 = vsel %vm481, %v520, %v428
        %vm530 = vcmp.eq.s32.totalorder %v430, 127
        %531 = vrot.lane.b32.xlu0 %v432, 1
        %v532 = vpop.permute.xlu0 %531
        %533 = vrot.lane.b32.xlu0 %v433, 1
        %v534 = vpop.permute.xlu0 %533
        %535 = vrot.lane.b32.xlu0 %v434, 1
        %v536 = vpop.permute.xlu0 %535
        %537 = vrot.lane.b32.xlu0 %v435, 1
        %v538 = vpop.permute.xlu0 %537
        %539 = vrot.lane.b32.xlu0 %v436, 1
        %v540 = vpop.permute.xlu0 %539
        %541 = vrot.lane.b32.xlu0 %v437, 1
        %v542 = vpop.permute.xlu0 %541
        %543 = vrot.lane.b32.xlu0 %v438, 1
        %v544 = vpop.permute.xlu0 %543
        %545 = vrot.lane.b32.xlu0 %v439, 1
        %v546 = vpop.permute.xlu0 %545
        %v555 = vadd.f32 %v373, %v532
        %v556 = vadd.f32 %v374, %v534
        %v557 = vadd.f32 %v375, %v536
        %v558 = vadd.f32 %v376, %v538
        %v559 = vadd.f32 %v377, %v540
        %v560 = vadd.f32 %v378, %v542
        %v561 = vadd.f32 %v379, %v544
        %v562 = vadd.f32 %v380, %v546
        %v563 = vsel %vm530, 1, 0
        %vm564 = vcmp.eq.s32.totalorder %v563, 1
        %566 = vset.pattern.permute.xlu0 127
        %567 = vperm.xlu0 %566, %v555
        %v568 = vpop.permute.xlu0 %567
        %571 = vset.pattern.permute.xlu0 127
        %572 = vperm.xlu0 %571, %v556
        %v573 = vpop.permute.xlu0 %572
        %576 = vset.pattern.permute.xlu0 127
        %577 = vperm.xlu0 %576, %v557
        %v578 = vpop.permute.xlu0 %577
        %581 = vset.pattern.permute.xlu0 127
        %582 = vperm.xlu0 %581, %v558
        %v583 = vpop.permute.xlu0 %582
        %586 = vset.pattern.permute.xlu0 127
        %587 = vperm.xlu0 %586, %v559
        %v588 = vpop.permute.xlu0 %587
        %591 = vset.pattern.permute.xlu0 127
        %592 = vperm.xlu0 %591, %v560
        %v593 = vpop.permute.xlu0 %592
        %596 = vset.pattern.permute.xlu0 127
        %597 = vperm.xlu0 %596, %v561
        %v598 = vpop.permute.xlu0 %597
        %601 = vset.pattern.permute.xlu0 127
        %602 = vperm.xlu0 %601, %v562
        %v603 = vpop.permute.xlu0 %602
        %v605 = vsel %vm564, %v568, %v522
        %v606 = vsel %vm564, %v573, %v523
        %v607 = vsel %vm564, %v578, %v524
        %v608 = vsel %vm564, %v583, %v525
        %v609 = vsel %vm564, %v588, %v526
        %v610 = vsel %vm564, %v593, %v527
        %v611 = vsel %vm564, %v598, %v528
        %v612 = vsel %vm564, %v603, %v529
        %v613 = vmul.f32 %v605, 0.11111111
        %v614 = vmul.f32 %v606, 0.11111111
        %v615 = vmul.f32 %v607, 0.11111111
        %v616 = vmul.f32 %v608, 0.11111111
        %v617 = vmul.f32 %v609, 0.11111111
        %v618 = vmul.f32 %v610, 0.11111111
        %v619 = vmul.f32 %v611, 0.11111111
        %v620 = vmul.f32 %v612, 0.11111111
        %v633 = vrot.slane %v283, 1
        %v634 = vrot.slane %v284, 1
        %v635 = vsel %vm307, %v633, %v634
        %v636 = vrot.slane %v285, 1
        %v637 = vsel %vm307, %v634, %v636
        %v638 = vrot.slane %v286, 1
        %v639 = vrot.slane %v287, 1
        %v640 = vsel %vm307, %v638, %v639
        %v641 = vrot.slane %v288, 1
        %v642 = vsel %vm307, %v639, %v641
        %v643 = vrot.slane %v289, 1
        %v644 = vrot.slane %v290, 1
        %v645 = vsel %vm307, %v643, %v644
        %v646 = vrot.slane %v291, 1
        %v647 = vsel %vm307, %v644, %v646
        %v648 = vrot.slane %v292, 1
        %v649 = vrot.slane %v293, 1
        %v650 = vsel %vm307, %v648, %v649
        %v651 = vrot.slane %v294, 1
        %v652 = vsel %vm307, %v649, %v651
        %v661 = vadd.f32 %v283, %v635
        %v662 = vadd.f32 %v284, %v637
        %v663 = vadd.f32 %v286, %v640
        %v664 = vadd.f32 %v287, %v642
        %v665 = vadd.f32 %v289, %v645
        %v666 = vadd.f32 %v290, %v647
        %v667 = vadd.f32 %v292, %v650
        %v668 = vadd.f32 %v293, %v652
        %v669 = vrot.slane %v283, 2
        %v670 = vrot.slane %v284, 2
        %v671 = vsel %vm344, %v669, %v670
        %v672 = vrot.slane %v285, 2
        %v673 = vsel %vm344, %v670, %v672
        %v674 = vrot.slane %v286, 2
        %v675 = vrot.slane %v287, 2
        %v676 = vsel %vm344, %v674, %v675
        %v677 = vrot.slane %v288, 2
        %v678 = vsel %vm344, %v675, %v677
        %v679 = vrot.slane %v289, 2
        %v680 = vrot.slane %v290, 2
        %v681 = vsel %vm344, %v679, %v680
        %v682 = vrot.slane %v291, 2
        %v683 = vsel %vm344, %v680, %v682
        %v684 = vrot.slane %v292, 2
        %v685 = vrot.slane %v293, 2
        %v686 = vsel %vm344, %v684, %v685
        %v687 = vrot.slane %v294, 2
        %v688 = vsel %vm344, %v685, %v687
        %v697 = vadd.f32 %v661, %v671
        %v698 = vadd.f32 %v662, %v673
        %v699 = vadd.f32 %v663, %v676
        %v700 = vadd.f32 %v664, %v678
        %v701 = vadd.f32 %v665, %v681
        %v702 = vadd.f32 %v666, %v683
        %v703 = vadd.f32 %v667, %v686
        %v704 = vadd.f32 %v668, %v688
        %705 = vrot.lane.b32.xlu0 %v697, 1
        %v706 = vpop.permute.xlu0 %705
        %707 = vrot.lane.b32.xlu0 %v698, 1
        %v708 = vpop.permute.xlu0 %707
        %709 = vrot.lane.b32.xlu0 %v699, 1
        %v710 = vpop.permute.xlu0 %709
        %711 = vrot.lane.b32.xlu0 %v700, 1
        %v712 = vpop.permute.xlu0 %711
        %713 = vrot.lane.b32.xlu0 %v701, 1
        %v714 = vpop.permute.xlu0 %713
        %715 = vrot.lane.b32.xlu0 %v702, 1
        %v716 = vpop.permute.xlu0 %715
        %717 = vrot.lane.b32.xlu0 %v703, 1
        %v718 = vpop.permute.xlu0 %717
        %719 = vrot.lane.b32.xlu0 %v704, 1
        %v720 = vpop.permute.xlu0 %719
        %v721 = vadd.f32 %v697, %v706
        %v722 = vadd.f32 %v698, %v708
        %v723 = vadd.f32 %v699, %v710
        %v724 = vadd.f32 %v700, %v712
        %v725 = vadd.f32 %v701, %v714
        %v726 = vadd.f32 %v702, %v716
        %v727 = vadd.f32 %v703, %v718
        %v728 = vadd.f32 %v704, %v720
        %729 = vrot.lane.b32.xlu0 %v697, 127
        %v730 = vpop.permute.xlu0 %729
        %731 = vrot.lane.b32.xlu0 %v698, 127
        %v732 = vpop.permute.xlu0 %731
        %733 = vrot.lane.b32.xlu0 %v699, 127
        %v734 = vpop.permute.xlu0 %733
        %735 = vrot.lane.b32.xlu0 %v700, 127
        %v736 = vpop.permute.xlu0 %735
        %737 = vrot.lane.b32.xlu0 %v701, 127
        %v738 = vpop.permute.xlu0 %737
        %739 = vrot.lane.b32.xlu0 %v702, 127
        %v740 = vpop.permute.xlu0 %739
        %741 = vrot.lane.b32.xlu0 %v703, 127
        %v742 = vpop.permute.xlu0 %741
        %743 = vrot.lane.b32.xlu0 %v704, 127
        %v744 = vpop.permute.xlu0 %743
        %v745 = vadd.f32 %v721, %v730
        %v746 = vadd.f32 %v722, %v732
        %v747 = vadd.f32 %v723, %v734
        %v748 = vadd.f32 %v724, %v736
        %v749 = vadd.f32 %v725, %v738
        %v750 = vadd.f32 %v726, %v740
        %v751 = vadd.f32 %v727, %v742
        %v752 = vadd.f32 %v728, %v744
        %v753 = vmul.f32 %v697, 2.0
        %v754 = vmul.f32 %v698, 2.0
        %v755 = vmul.f32 %v699, 2.0
        %v756 = vmul.f32 %v700, 2.0
        %v757 = vmul.f32 %v701, 2.0
        %v758 = vmul.f32 %v702, 2.0
        %v759 = vmul.f32 %v703, 2.0
        %v760 = vmul.f32 %v704, 2.0
        %769 = vrot.lane.b32.xlu0 %v753, 127
        %v770 = vpop.permute.xlu0 %769
        %771 = vrot.lane.b32.xlu0 %v754, 127
        %v772 = vpop.permute.xlu0 %771
        %773 = vrot.lane.b32.xlu0 %v755, 127
        %v774 = vpop.permute.xlu0 %773
        %775 = vrot.lane.b32.xlu0 %v756, 127
        %v776 = vpop.permute.xlu0 %775
        %777 = vrot.lane.b32.xlu0 %v757, 127
        %v778 = vpop.permute.xlu0 %777
        %779 = vrot.lane.b32.xlu0 %v758, 127
        %v780 = vpop.permute.xlu0 %779
        %781 = vrot.lane.b32.xlu0 %v759, 127
        %v782 = vpop.permute.xlu0 %781
        %783 = vrot.lane.b32.xlu0 %v760, 127
        %v784 = vpop.permute.xlu0 %783
        %v793 = vadd.f32 %v697, %v770
        %v794 = vadd.f32 %v698, %v772
        %v795 = vadd.f32 %v699, %v774
        %v796 = vadd.f32 %v700, %v776
        %v797 = vadd.f32 %v701, %v778
        %v798 = vadd.f32 %v702, %v780
        %v799 = vadd.f32 %v703, %v782
        %v800 = vadd.f32 %v704, %v784
        %802 = vset.pattern.permute.xlu0 0
        %803 = vperm.xlu0 %802, %v793
        %v804 = vpop.permute.xlu0 %803
        %807 = vset.pattern.permute.xlu0 0
        %808 = vperm.xlu0 %807, %v794
        %v809 = vpop.permute.xlu0 %808
        %812 = vset.pattern.permute.xlu0 0
        %813 = vperm.xlu0 %812, %v795
        %v814 = vpop.permute.xlu0 %813
        %817 = vset.pattern.permute.xlu0 0
        %818 = vperm.xlu0 %817, %v796
        %v819 = vpop.permute.xlu0 %818
        %822 = vset.pattern.permute.xlu0 0
        %823 = vperm.xlu0 %822, %v797
        %v824 = vpop.permute.xlu0 %823
        %827 = vset.pattern.permute.xlu0 0
        %828 = vperm.xlu0 %827, %v798
        %v829 = vpop.permute.xlu0 %828
        %832 = vset.pattern.permute.xlu0 0
        %833 = vperm.xlu0 %832, %v799
        %v834 = vpop.permute.xlu0 %833
        %837 = vset.pattern.permute.xlu0 0
        %838 = vperm.xlu0 %837, %v800
        %v839 = vpop.permute.xlu0 %838
        %v841 = vsel %vm481, %v804, %v745
        %v842 = vsel %vm481, %v809, %v746
        %v843 = vsel %vm481, %v814, %v747
        %v844 = vsel %vm481, %v819, %v748
        %v845 = vsel %vm481, %v824, %v749
        %v846 = vsel %vm481, %v829, %v750
        %v847 = vsel %vm481, %v834, %v751
        %v848 = vsel %vm481, %v839, %v752
        %849 = vrot.lane.b32.xlu0 %v753, 1
        %v850 = vpop.permute.xlu0 %849
        %851 = vrot.lane.b32.xlu0 %v754, 1
        %v852 = vpop.permute.xlu0 %851
        %853 = vrot.lane.b32.xlu0 %v755, 1
        %v854 = vpop.permute.xlu0 %853
        %855 = vrot.lane.b32.xlu0 %v756, 1
        %v856 = vpop.permute.xlu0 %855
        %857 = vrot.lane.b32.xlu0 %v757, 1
        %v858 = vpop.permute.xlu0 %857
        %859 = vrot.lane.b32.xlu0 %v758, 1
        %v860 = vpop.permute.xlu0 %859
        %861 = vrot.lane.b32.xlu0 %v759, 1
        %v862 = vpop.permute.xlu0 %861
        %863 = vrot.lane.b32.xlu0 %v760, 1
        %v864 = vpop.permute.xlu0 %863
        %v873 = vadd.f32 %v697, %v850
        %v874 = vadd.f32 %v698, %v852
        %v875 = vadd.f32 %v699, %v854
        %v876 = vadd.f32 %v700, %v856
        %v877 = vadd.f32 %v701, %v858
        %v878 = vadd.f32 %v702, %v860
        %v879 = vadd.f32 %v703, %v862
        %v880 = vadd.f32 %v704, %v864
        %882 = vset.pattern.permute.xlu0 127
        %883 = vperm.xlu0 %882, %v873
        %v884 = vpop.permute.xlu0 %883
        %887 = vset.pattern.permute.xlu0 127
        %888 = vperm.xlu0 %887, %v874
        %v889 = vpop.permute.xlu0 %888
        %892 = vset.pattern.permute.xlu0 127
        %893 = vperm.xlu0 %892, %v875
        %v894 = vpop.permute.xlu0 %893
        %897 = vset.pattern.permute.xlu0 127
        %898 = vperm.xlu0 %897, %v876
        %v899 = vpop.permute.xlu0 %898
        %902 = vset.pattern.permute.xlu0 127
        %903 = vperm.xlu0 %902, %v877
        %v904 = vpop.permute.xlu0 %903
        %907 = vset.pattern.permute.xlu0 127
        %908 = vperm.xlu0 %907, %v878
        %v909 = vpop.permute.xlu0 %908
        %912 = vset.pattern.permute.xlu0 127
        %913 = vperm.xlu0 %912, %v879
        %v914 = vpop.permute.xlu0 %913
        %917 = vset.pattern.permute.xlu0 127
        %918 = vperm.xlu0 %917, %v880
        %v919 = vpop.permute.xlu0 %918
        %v921 = vsel %vm564, %v884, %v841
        %v922 = vsel %vm564, %v889, %v842
        %v923 = vsel %vm564, %v894, %v843
        %v924 = vsel %vm564, %v899, %v844
        %v925 = vsel %vm564, %v904, %v845
        %v926 = vsel %vm564, %v909, %v846
        %v927 = vsel %vm564, %v914, %v847
        %v928 = vsel %vm564, %v919, %v848
        %v929 = vmul.f32 %v921, 0.11111111
        %v930 = vmul.f32 %v922, 0.11111111
        %v931 = vmul.f32 %v923, 0.11111111
        %v932 = vmul.f32 %v924, 0.11111111
        %v933 = vmul.f32 %v925, 0.11111111
        %v934 = vmul.f32 %v926, 0.11111111
        %v935 = vmul.f32 %v927, 0.11111111
        %v936 = vmul.f32 %v928, 0.11111111
        %v937 = vmul.f32 %v271, %v271
        %v938 = vmul.f32 %v272, %v272
        %v939 = vmul.f32 %v273, %v273
        %v940 = vmul.f32 %v274, %v274
        %v941 = vmul.f32 %v275, %v275
        %v942 = vmul.f32 %v276, %v276
        %v943 = vmul.f32 %v277, %v277
        %v944 = vmul.f32 %v278, %v278
        %v945 = vmul.f32 %v279, %v279
        %v946 = vmul.f32 %v280, %v280
        %v947 = vmul.f32 %v281, %v281
        %v948 = vmul.f32 %v282, %v282
        %v961 = vrot.slane %v937, 1
        %v962 = vrot.slane %v938, 1
        %v963 = vsel %vm307, %v961, %v962
        %v964 = vrot.slane %v939, 1
        %v965 = vsel %vm307, %v962, %v964
        %v966 = vrot.slane %v940, 1
        %v967 = vrot.slane %v941, 1
        %v968 = vsel %vm307, %v966, %v967
        %v969 = vrot.slane %v942, 1
        %v970 = vsel %vm307, %v967, %v969
        %v971 = vrot.slane %v943, 1
        %v972 = vrot.slane %v944, 1
        %v973 = vsel %vm307, %v971, %v972
        %v974 = vrot.slane %v945, 1
        %v975 = vsel %vm307, %v972, %v974
        %v976 = vrot.slane %v946, 1
        %v977 = vrot.slane %v947, 1
        %v978 = vsel %vm307, %v976, %v977
        %v979 = vrot.slane %v948, 1
        %v980 = vsel %vm307, %v977, %v979
        %v989 = vadd.f32 %v937, %v963
        %v990 = vadd.f32 %v938, %v965
        %v991 = vadd.f32 %v940, %v968
        %v992 = vadd.f32 %v941, %v970
        %v993 = vadd.f32 %v943, %v973
        %v994 = vadd.f32 %v944, %v975
        %v995 = vadd.f32 %v946, %v978
        %v996 = vadd.f32 %v947, %v980
        %v997 = vrot.slane %v937, 2
        %v998 = vrot.slane %v938, 2
        %v999 = vsel %vm344, %v997, %v998
        %v1000 = vrot.slane %v939, 2
        %v1001 = vsel %vm344, %v998, %v1000
        %v1002 = vrot.slane %v940, 2
        %v1003 = vrot.slane %v941, 2
        %v1004 = vsel %vm344, %v1002, %v1003
        %v1005 = vrot.slane %v942, 2
        %v1006 = vsel %vm344, %v1003, %v1005
        %v1007 = vrot.slane %v943, 2
        %v1008 = vrot.slane %v944, 2
        %v1009 = vsel %vm344, %v1007, %v1008
        %v1010 = vrot.slane %v945, 2
        %v1011 = vsel %vm344, %v1008, %v1010
        %v1012 = vrot.slane %v946, 2
        %v1013 = vrot.slane %v947, 2
        %v1014 = vsel %vm344, %v1012, %v1013
        %v1015 = vrot.slane %v948, 2
        %v1016 = vsel %vm344, %v1013, %v1015
        %v1025 = vadd.f32 %v989, %v999
        %v1026 = vadd.f32 %v990, %v1001
        %v1027 = vadd.f32 %v991, %v1004
        %v1028 = vadd.f32 %v992, %v1006
        %v1029 = vadd.f32 %v993, %v1009
        %v1030 = vadd.f32 %v994, %v1011
        %v1031 = vadd.f32 %v995, %v1014
        %v1032 = vadd.f32 %v996, %v1016
        %1033 = vrot.lane.b32.xlu0 %v1025, 1
        %v1034 = vpop.permute.xlu0 %1033
        %1035 = vrot.lane.b32.xlu0 %v1026, 1
        %v1036 = vpop.permute.xlu0 %1035
        %1037 = vrot.lane.b32.xlu0 %v1027, 1
        %v1038 = vpop.permute.xlu0 %1037
        %1039 = vrot.lane.b32.xlu0 %v1028, 1
        %v1040 = vpop.permute.xlu0 %1039
        %1041 = vrot.lane.b32.xlu0 %v1029, 1
        %v1042 = vpop.permute.xlu0 %1041
        %1043 = vrot.lane.b32.xlu0 %v1030, 1
        %v1044 = vpop.permute.xlu0 %1043
        %1045 = vrot.lane.b32.xlu0 %v1031, 1
        %v1046 = vpop.permute.xlu0 %1045
        %1047 = vrot.lane.b32.xlu0 %v1032, 1
        %v1048 = vpop.permute.xlu0 %1047
        %v1049 = vadd.f32 %v1025, %v1034
        %v1050 = vadd.f32 %v1026, %v1036
        %v1051 = vadd.f32 %v1027, %v1038
        %v1052 = vadd.f32 %v1028, %v1040
        %v1053 = vadd.f32 %v1029, %v1042
        %v1054 = vadd.f32 %v1030, %v1044
        %v1055 = vadd.f32 %v1031, %v1046
        %v1056 = vadd.f32 %v1032, %v1048
        %1057 = vrot.lane.b32.xlu0 %v1025, 127
        %v1058 = vpop.permute.xlu0 %1057
        %1059 = vrot.lane.b32.xlu0 %v1026, 127
        %v1060 = vpop.permute.xlu0 %1059
        %1061 = vrot.lane.b32.xlu0 %v1027, 127
        %v1062 = vpop.permute.xlu0 %1061
        %1063 = vrot.lane.b32.xlu0 %v1028, 127
        %v1064 = vpop.permute.xlu0 %1063
        %1065 = vrot.lane.b32.xlu0 %v1029, 127
        %v1066 = vpop.permute.xlu0 %1065
        %1067 = vrot.lane.b32.xlu0 %v1030, 127
        %v1068 = vpop.permute.xlu0 %1067
        %1069 = vrot.lane.b32.xlu0 %v1031, 127
        %v1070 = vpop.permute.xlu0 %1069
        %1071 = vrot.lane.b32.xlu0 %v1032, 127
        %v1072 = vpop.permute.xlu0 %1071
        %v1073 = vadd.f32 %v1049, %v1058
        %v1074 = vadd.f32 %v1050, %v1060
        %v1075 = vadd.f32 %v1051, %v1062
        %v1076 = vadd.f32 %v1052, %v1064
        %v1077 = vadd.f32 %v1053, %v1066
        %v1078 = vadd.f32 %v1054, %v1068
        %v1079 = vadd.f32 %v1055, %v1070
        %v1080 = vadd.f32 %v1056, %v1072
        %v1081 = vmul.f32 %v1025, 2.0
        %v1082 = vmul.f32 %v1026, 2.0
        %v1083 = vmul.f32 %v1027, 2.0
        %v1084 = vmul.f32 %v1028, 2.0
        %v1085 = vmul.f32 %v1029, 2.0
        %v1086 = vmul.f32 %v1030, 2.0
        %v1087 = vmul.f32 %v1031, 2.0
        %v1088 = vmul.f32 %v1032, 2.0
        %1097 = vrot.lane.b32.xlu0 %v1081, 127
        %v1098 = vpop.permute.xlu0 %1097
        %1099 = vrot.lane.b32.xlu0 %v1082, 127
        %v1100 = vpop.permute.xlu0 %1099
        %1101 = vrot.lane.b32.xlu0 %v1083, 127
        %v1102 = vpop.permute.xlu0 %1101
        %1103 = vrot.lane.b32.xlu0 %v1084, 127
        %v1104 = vpop.permute.xlu0 %1103
        %1105 = vrot.lane.b32.xlu0 %v1085, 127
        %v1106 = vpop.permute.xlu0 %1105
        %1107 = vrot.lane.b32.xlu0 %v1086, 127
        %v1108 = vpop.permute.xlu0 %1107
        %1109 = vrot.lane.b32.xlu0 %v1087, 127
        %v1110 = vpop.permute.xlu0 %1109
        %1111 = vrot.lane.b32.xlu0 %v1088, 127
        %v1112 = vpop.permute.xlu0 %1111
        %v1121 = vadd.f32 %v1025, %v1098
        %v1122 = vadd.f32 %v1026, %v1100
        %v1123 = vadd.f32 %v1027, %v1102
        %v1124 = vadd.f32 %v1028, %v1104
        %v1125 = vadd.f32 %v1029, %v1106
        %v1126 = vadd.f32 %v1030, %v1108
        %v1127 = vadd.f32 %v1031, %v1110
        %v1128 = vadd.f32 %v1032, %v1112
        %1130 = vset.pattern.permute.xlu0 0
        %1131 = vperm.xlu0 %1130, %v1121
        %v1132 = vpop.permute.xlu0 %1131
        %1135 = vset.pattern.permute.xlu0 0
        %1136 = vperm.xlu0 %1135, %v1122
        %v1137 = vpop.permute.xlu0 %1136
        %1140 = vset.pattern.permute.xlu0 0
        %1141 = vperm.xlu0 %1140, %v1123
        %v1142 = vpop.permute.xlu0 %1141
        %1145 = vset.pattern.permute.xlu0 0
        %1146 = vperm.xlu0 %1145, %v1124
        %v1147 = vpop.permute.xlu0 %1146
        %1150 = vset.pattern.permute.xlu0 0
        %1151 = vperm.xlu0 %1150, %v1125
        %v1152 = vpop.permute.xlu0 %1151
        %1155 = vset.pattern.permute.xlu0 0
        %1156 = vperm.xlu0 %1155, %v1126
        %v1157 = vpop.permute.xlu0 %1156
        %1160 = vset.pattern.permute.xlu0 0
        %1161 = vperm.xlu0 %1160, %v1127
        %v1162 = vpop.permute.xlu0 %1161
        %1165 = vset.pattern.permute.xlu0 0
        %1166 = vperm.xlu0 %1165, %v1128
        %v1167 = vpop.permute.xlu0 %1166
        %v1169 = vsel %vm481, %v1132, %v1073
        %v1170 = vsel %vm481, %v1137, %v1074
        %v1171 = vsel %vm481, %v1142, %v1075
        %v1172 = vsel %vm481, %v1147, %v1076
        %v1173 = vsel %vm481, %v1152, %v1077
        %v1174 = vsel %vm481, %v1157, %v1078
        %v1175 = vsel %vm481, %v1162, %v1079
        %v1176 = vsel %vm481, %v1167, %v1080
        %1177 = vrot.lane.b32.xlu0 %v1081, 1
        %v1178 = vpop.permute.xlu0 %1177
        %1179 = vrot.lane.b32.xlu0 %v1082, 1
        %v1180 = vpop.permute.xlu0 %1179
        %1181 = vrot.lane.b32.xlu0 %v1083, 1
        %v1182 = vpop.permute.xlu0 %1181
        %1183 = vrot.lane.b32.xlu0 %v1084, 1
        %v1184 = vpop.permute.xlu0 %1183
        %1185 = vrot.lane.b32.xlu0 %v1085, 1
        %v1186 = vpop.permute.xlu0 %1185
        %1187 = vrot.lane.b32.xlu0 %v1086, 1
        %v1188 = vpop.permute.xlu0 %1187
        %1189 = vrot.lane.b32.xlu0 %v1087, 1
        %v1190 = vpop.permute.xlu0 %1189
        %1191 = vrot.lane.b32.xlu0 %v1088, 1
        %v1192 = vpop.permute.xlu0 %1191
        %v1201 = vadd.f32 %v1025, %v1178
        %v1202 = vadd.f32 %v1026, %v1180
        %v1203 = vadd.f32 %v1027, %v1182
        %v1204 = vadd.f32 %v1028, %v1184
        %v1205 = vadd.f32 %v1029, %v1186
        %v1206 = vadd.f32 %v1030, %v1188
        %v1207 = vadd.f32 %v1031, %v1190
        %v1208 = vadd.f32 %v1032, %v1192
        %1210 = vset.pattern.permute.xlu0 127
        %1211 = vperm.xlu0 %1210, %v1201
        %v1212 = vpop.permute.xlu0 %1211
        %1215 = vset.pattern.permute.xlu0 127
        %1216 = vperm.xlu0 %1215, %v1202
        %v1217 = vpop.permute.xlu0 %1216
        %1220 = vset.pattern.permute.xlu0 127
        %1221 = vperm.xlu0 %1220, %v1203
        %v1222 = vpop.permute.xlu0 %1221
        %1225 = vset.pattern.permute.xlu0 127
        %1226 = vperm.xlu0 %1225, %v1204
        %v1227 = vpop.permute.xlu0 %1226
        %1230 = vset.pattern.permute.xlu0 127
        %1231 = vperm.xlu0 %1230, %v1205
        %v1232 = vpop.permute.xlu0 %1231
        %1235 = vset.pattern.permute.xlu0 127
        %1236 = vperm.xlu0 %1235, %v1206
        %v1237 = vpop.permute.xlu0 %1236
        %1240 = vset.pattern.permute.xlu0 127
        %1241 = vperm.xlu0 %1240, %v1207
        %v1242 = vpop.permute.xlu0 %1241
        %1245 = vset.pattern.permute.xlu0 127
        %1246 = vperm.xlu0 %1245, %v1208
        %v1247 = vpop.permute.xlu0 %1246
        %v1249 = vsel %vm564, %v1212, %v1169
        %v1250 = vsel %vm564, %v1217, %v1170
        %v1251 = vsel %vm564, %v1222, %v1171
        %v1252 = vsel %vm564, %v1227, %v1172
        %v1253 = vsel %vm564, %v1232, %v1173
        %v1254 = vsel %vm564, %v1237, %v1174
        %v1255 = vsel %vm564, %v1242, %v1175
        %v1256 = vsel %vm564, %v1247, %v1176
        %v1257 = vmul.f32 %v1249, 0.11111111
        %v1258 = vmul.f32 %v1250, 0.11111111
        %v1259 = vmul.f32 %v1251, 0.11111111
        %v1260 = vmul.f32 %v1252, 0.11111111
        %v1261 = vmul.f32 %v1253, 0.11111111
        %v1262 = vmul.f32 %v1254, 0.11111111
        %v1263 = vmul.f32 %v1255, 0.11111111
        %v1264 = vmul.f32 %v1256, 0.11111111
        %v1265 = vmul.f32 %v283, %v283
        %v1266 = vmul.f32 %v284, %v284
        %v1267 = vmul.f32 %v285, %v285
        %v1268 = vmul.f32 %v286, %v286
        %v1269 = vmul.f32 %v287, %v287
        %v1270 = vmul.f32 %v288, %v288
        %v1271 = vmul.f32 %v289, %v289
        %v1272 = vmul.f32 %v290, %v290
        %v1273 = vmul.f32 %v291, %v291
        %v1274 = vmul.f32 %v292, %v292
        %v1275 = vmul.f32 %v293, %v293
        %v1276 = vmul.f32 %v294, %v294
        %v1289 = vrot.slane %v1265, 1
        %v1290 = vrot.slane %v1266, 1
        %v1291 = vsel %vm307, %v1289, %v1290
        %v1292 = vrot.slane %v1267, 1
        %v1293 = vsel %vm307, %v1290, %v1292
        %v1294 = vrot.slane %v1268, 1
        %v1295 = vrot.slane %v1269, 1
        %v1296 = vsel %vm307, %v1294, %v1295
        %v1297 = vrot.slane %v1270, 1
        %v1298 = vsel %vm307, %v1295, %v1297
        %v1299 = vrot.slane %v1271, 1
        %v1300 = vrot.slane %v1272, 1
        %v1301 = vsel %vm307, %v1299, %v1300
        %v1302 = vrot.slane %v1273, 1
        %v1303 = vsel %vm307, %v1300, %v1302
        %v1304 = vrot.slane %v1274, 1
        %v1305 = vrot.slane %v1275, 1
        %v1306 = vsel %vm307, %v1304, %v1305
        %v1307 = vrot.slane %v1276, 1
        %v1308 = vsel %vm307, %v1305, %v1307
        %v1317 = vadd.f32 %v1265, %v1291
        %v1318 = vadd.f32 %v1266, %v1293
        %v1319 = vadd.f32 %v1268, %v1296
        %v1320 = vadd.f32 %v1269, %v1298
        %v1321 = vadd.f32 %v1271, %v1301
        %v1322 = vadd.f32 %v1272, %v1303
        %v1323 = vadd.f32 %v1274, %v1306
        %v1324 = vadd.f32 %v1275, %v1308
        %v1325 = vrot.slane %v1265, 2
        %v1326 = vrot.slane %v1266, 2
        %v1327 = vsel %vm344, %v1325, %v1326
        %v1328 = vrot.slane %v1267, 2
        %v1329 = vsel %vm344, %v1326, %v1328
        %v1330 = vrot.slane %v1268, 2
        %v1331 = vrot.slane %v1269, 2
        %v1332 = vsel %vm344, %v1330, %v1331
        %v1333 = vrot.slane %v1270, 2
        %v1334 = vsel %vm344, %v1331, %v1333
        %v1335 = vrot.slane %v1271, 2
        %v1336 = vrot.slane %v1272, 2
        %v1337 = vsel %vm344, %v1335, %v1336
        %v1338 = vrot.slane %v1273, 2
        %v1339 = vsel %vm344, %v1336, %v1338
        %v1340 = vrot.slane %v1274, 2
        %v1341 = vrot.slane %v1275, 2
        %v1342 = vsel %vm344, %v1340, %v1341
        %v1343 = vrot.slane %v1276, 2
        %v1344 = vsel %vm344, %v1341, %v1343
        %v1353 = vadd.f32 %v1317, %v1327
        %v1354 = vadd.f32 %v1318, %v1329
        %v1355 = vadd.f32 %v1319, %v1332
        %v1356 = vadd.f32 %v1320, %v1334
        %v1357 = vadd.f32 %v1321, %v1337
        %v1358 = vadd.f32 %v1322, %v1339
        %v1359 = vadd.f32 %v1323, %v1342
        %v1360 = vadd.f32 %v1324, %v1344
        %1361 = vrot.lane.b32.xlu0 %v1353, 1
        %v1362 = vpop.permute.xlu0 %1361
        %1363 = vrot.lane.b32.xlu0 %v1354, 1
        %v1364 = vpop.permute.xlu0 %1363
        %1365 = vrot.lane.b32.xlu0 %v1355, 1
        %v1366 = vpop.permute.xlu0 %1365
        %1367 = vrot.lane.b32.xlu0 %v1356, 1
        %v1368 = vpop.permute.xlu0 %1367
        %1369 = vrot.lane.b32.xlu0 %v1357, 1
        %v1370 = vpop.permute.xlu0 %1369
        %1371 = vrot.lane.b32.xlu0 %v1358, 1
        %v1372 = vpop.permute.xlu0 %1371
        %1373 = vrot.lane.b32.xlu0 %v1359, 1
        %v1374 = vpop.permute.xlu0 %1373
        %1375 = vrot.lane.b32.xlu0 %v1360, 1
        %v1376 = vpop.permute.xlu0 %1375
        %v1377 = vadd.f32 %v1353, %v1362
        %v1378 = vadd.f32 %v1354, %v1364
        %v1379 = vadd.f32 %v1355, %v1366
        %v1380 = vadd.f32 %v1356, %v1368
        %v1381 = vadd.f32 %v1357, %v1370
        %v1382 = vadd.f32 %v1358, %v1372
        %v1383 = vadd.f32 %v1359, %v1374
        %v1384 = vadd.f32 %v1360, %v1376
        %1385 = vrot.lane.b32.xlu0 %v1353, 127
        %v1386 = vpop.permute.xlu0 %1385
        %1387 = vrot.lane.b32.xlu0 %v1354, 127
        %v1388 = vpop.permute.xlu0 %1387
        %1389 = vrot.lane.b32.xlu0 %v1355, 127
        %v1390 = vpop.permute.xlu0 %1389
        %1391 = vrot.lane.b32.xlu0 %v1356, 127
        %v1392 = vpop.permute.xlu0 %1391
        %1393 = vrot.lane.b32.xlu0 %v1357, 127
        %v1394 = vpop.permute.xlu0 %1393
        %1395 = vrot.lane.b32.xlu0 %v1358, 127
        %v1396 = vpop.permute.xlu0 %1395
        %1397 = vrot.lane.b32.xlu0 %v1359, 127
        %v1398 = vpop.permute.xlu0 %1397
        %1399 = vrot.lane.b32.xlu0 %v1360, 127
        %v1400 = vpop.permute.xlu0 %1399
        %v1401 = vadd.f32 %v1377, %v1386
        %v1402 = vadd.f32 %v1378, %v1388
        %v1403 = vadd.f32 %v1379, %v1390
        %v1404 = vadd.f32 %v1380, %v1392
        %v1405 = vadd.f32 %v1381, %v1394
        %v1406 = vadd.f32 %v1382, %v1396
        %v1407 = vadd.f32 %v1383, %v1398
        %v1408 = vadd.f32 %v1384, %v1400
        %v1409 = vmul.f32 %v1353, 2.0
        %v1410 = vmul.f32 %v1354, 2.0
        %v1411 = vmul.f32 %v1355, 2.0
        %v1412 = vmul.f32 %v1356, 2.0
        %v1413 = vmul.f32 %v1357, 2.0
        %v1414 = vmul.f32 %v1358, 2.0
        %v1415 = vmul.f32 %v1359, 2.0
        %v1416 = vmul.f32 %v1360, 2.0
        %1425 = vrot.lane.b32.xlu0 %v1409, 127
        %v1426 = vpop.permute.xlu0 %1425
        %1427 = vrot.lane.b32.xlu0 %v1410, 127
        %v1428 = vpop.permute.xlu0 %1427
        %1429 = vrot.lane.b32.xlu0 %v1411, 127
        %v1430 = vpop.permute.xlu0 %1429
        %1431 = vrot.lane.b32.xlu0 %v1412, 127
        %v1432 = vpop.permute.xlu0 %1431
        %1433 = vrot.lane.b32.xlu0 %v1413, 127
        %v1434 = vpop.permute.xlu0 %1433
        %1435 = vrot.lane.b32.xlu0 %v1414, 127
        %v1436 = vpop.permute.xlu0 %1435
        %1437 = vrot.lane.b32.xlu0 %v1415, 127
        %v1438 = vpop.permute.xlu0 %1437
        %1439 = vrot.lane.b32.xlu0 %v1416, 127
        %v1440 = vpop.permute.xlu0 %1439
        %v1449 = vadd.f32 %v1353, %v1426
        %v1450 = vadd.f32 %v1354, %v1428
        %v1451 = vadd.f32 %v1355, %v1430
        %v1452 = vadd.f32 %v1356, %v1432
        %v1453 = vadd.f32 %v1357, %v1434
        %v1454 = vadd.f32 %v1358, %v1436
        %v1455 = vadd.f32 %v1359, %v1438
        %v1456 = vadd.f32 %v1360, %v1440
        %1458 = vset.pattern.permute.xlu0 0
        %1459 = vperm.xlu0 %1458, %v1449
        %v1460 = vpop.permute.xlu0 %1459
        %1463 = vset.pattern.permute.xlu0 0
        %1464 = vperm.xlu0 %1463, %v1450
        %v1465 = vpop.permute.xlu0 %1464
        %1468 = vset.pattern.permute.xlu0 0
        %1469 = vperm.xlu0 %1468, %v1451
        %v1470 = vpop.permute.xlu0 %1469
        %1473 = vset.pattern.permute.xlu0 0
        %1474 = vperm.xlu0 %1473, %v1452
        %v1475 = vpop.permute.xlu0 %1474
        %1478 = vset.pattern.permute.xlu0 0
        %1479 = vperm.xlu0 %1478, %v1453
        %v1480 = vpop.permute.xlu0 %1479
        %1483 = vset.pattern.permute.xlu0 0
        %1484 = vperm.xlu0 %1483, %v1454
        %v1485 = vpop.permute.xlu0 %1484
        %1488 = vset.pattern.permute.xlu0 0
        %1489 = vperm.xlu0 %1488, %v1455
        %v1490 = vpop.permute.xlu0 %1489
        %1493 = vset.pattern.permute.xlu0 0
        %1494 = vperm.xlu0 %1493, %v1456
        %v1495 = vpop.permute.xlu0 %1494
        %v1497 = vsel %vm481, %v1460, %v1401
        %v1498 = vsel %vm481, %v1465, %v1402
        %v1499 = vsel %vm481, %v1470, %v1403
        %v1500 = vsel %vm481, %v1475, %v1404
        %v1501 = vsel %vm481, %v1480, %v1405
        %v1502 = vsel %vm481, %v1485, %v1406
        %v1503 = vsel %vm481, %v1490, %v1407
        %v1504 = vsel %vm481, %v1495, %v1408
        %1505 = vrot.lane.b32.xlu0 %v1409, 1
        %v1506 = vpop.permute.xlu0 %1505
        %1507 = vrot.lane.b32.xlu0 %v1410, 1
        %v1508 = vpop.permute.xlu0 %1507
        %1509 = vrot.lane.b32.xlu0 %v1411, 1
        %v1510 = vpop.permute.xlu0 %1509
        %1511 = vrot.lane.b32.xlu0 %v1412, 1
        %v1512 = vpop.permute.xlu0 %1511
        %1513 = vrot.lane.b32.xlu0 %v1413, 1
        %v1514 = vpop.permute.xlu0 %1513
        %1515 = vrot.lane.b32.xlu0 %v1414, 1
        %v1516 = vpop.permute.xlu0 %1515
        %1517 = vrot.lane.b32.xlu0 %v1415, 1
        %v1518 = vpop.permute.xlu0 %1517
        %1519 = vrot.lane.b32.xlu0 %v1416, 1
        %v1520 = vpop.permute.xlu0 %1519
        %v1529 = vadd.f32 %v1353, %v1506
        %v1530 = vadd.f32 %v1354, %v1508
        %v1531 = vadd.f32 %v1355, %v1510
        %v1532 = vadd.f32 %v1356, %v1512
        %v1533 = vadd.f32 %v1357, %v1514
        %v1534 = vadd.f32 %v1358, %v1516
        %v1535 = vadd.f32 %v1359, %v1518
        %v1536 = vadd.f32 %v1360, %v1520
        %1538 = vset.pattern.permute.xlu0 127
        %1539 = vperm.xlu0 %1538, %v1529
        %v1540 = vpop.permute.xlu0 %1539
        %1543 = vset.pattern.permute.xlu0 127
        %1544 = vperm.xlu0 %1543, %v1530
        %v1545 = vpop.permute.xlu0 %1544
        %1548 = vset.pattern.permute.xlu0 127
        %1549 = vperm.xlu0 %1548, %v1531
        %v1550 = vpop.permute.xlu0 %1549
        %1553 = vset.pattern.permute.xlu0 127
        %1554 = vperm.xlu0 %1553, %v1532
        %v1555 = vpop.permute.xlu0 %1554
        %1558 = vset.pattern.permute.xlu0 127
        %1559 = vperm.xlu0 %1558, %v1533
        %v1560 = vpop.permute.xlu0 %1559
        %1563 = vset.pattern.permute.xlu0 127
        %1564 = vperm.xlu0 %1563, %v1534
        %v1565 = vpop.permute.xlu0 %1564
        %1568 = vset.pattern.permute.xlu0 127
        %1569 = vperm.xlu0 %1568, %v1535
        %v1570 = vpop.permute.xlu0 %1569
        %1573 = vset.pattern.permute.xlu0 127
        %1574 = vperm.xlu0 %1573, %v1536
        %v1575 = vpop.permute.xlu0 %1574
        %v1577 = vsel %vm564, %v1540, %v1497
        %v1578 = vsel %vm564, %v1545, %v1498
        %v1579 = vsel %vm564, %v1550, %v1499
        %v1580 = vsel %vm564, %v1555, %v1500
        %v1581 = vsel %vm564, %v1560, %v1501
        %v1582 = vsel %vm564, %v1565, %v1502
        %v1583 = vsel %vm564, %v1570, %v1503
        %v1584 = vsel %vm564, %v1575, %v1504
        %v1585 = vmul.f32 %v1577, 0.11111111
        %v1586 = vmul.f32 %v1578, 0.11111111
        %v1587 = vmul.f32 %v1579, 0.11111111
        %v1588 = vmul.f32 %v1580, 0.11111111
        %v1589 = vmul.f32 %v1581, 0.11111111
        %v1590 = vmul.f32 %v1582, 0.11111111
        %v1591 = vmul.f32 %v1583, 0.11111111
        %v1592 = vmul.f32 %v1584, 0.11111111
        %v1593 = vmul.f32 %v271, %v283
        %v1594 = vmul.f32 %v272, %v284
        %v1595 = vmul.f32 %v273, %v285
        %v1596 = vmul.f32 %v274, %v286
        %v1597 = vmul.f32 %v275, %v287
        %v1598 = vmul.f32 %v276, %v288
        %v1599 = vmul.f32 %v277, %v289
        %v1600 = vmul.f32 %v278, %v290
        %v1601 = vmul.f32 %v279, %v291
        %v1602 = vmul.f32 %v280, %v292
        %v1603 = vmul.f32 %v281, %v293
        %v1604 = vmul.f32 %v282, %v294
        %v1617 = vrot.slane %v1593, 1
        %v1618 = vrot.slane %v1594, 1
        %v1619 = vsel %vm307, %v1617, %v1618
        %v1620 = vrot.slane %v1595, 1
        %v1621 = vsel %vm307, %v1618, %v1620
        %v1622 = vrot.slane %v1596, 1
        %v1623 = vrot.slane %v1597, 1
        %v1624 = vsel %vm307, %v1622, %v1623
        %v1625 = vrot.slane %v1598, 1
        %v1626 = vsel %vm307, %v1623, %v1625
        %v1627 = vrot.slane %v1599, 1
        %v1628 = vrot.slane %v1600, 1
        %v1629 = vsel %vm307, %v1627, %v1628
        %v1630 = vrot.slane %v1601, 1
        %v1631 = vsel %vm307, %v1628, %v1630
        %v1632 = vrot.slane %v1602, 1
        %v1633 = vrot.slane %v1603, 1
        %v1634 = vsel %vm307, %v1632, %v1633
        %v1635 = vrot.slane %v1604, 1
        %v1636 = vsel %vm307, %v1633, %v1635
        %v1645 = vadd.f32 %v1593, %v1619
        %v1646 = vadd.f32 %v1594, %v1621
        %v1647 = vadd.f32 %v1596, %v1624
        %v1648 = vadd.f32 %v1597, %v1626
        %v1649 = vadd.f32 %v1599, %v1629
        %v1650 = vadd.f32 %v1600, %v1631
        %v1651 = vadd.f32 %v1602, %v1634
        %v1652 = vadd.f32 %v1603, %v1636
        %v1653 = vrot.slane %v1593, 2
        %v1654 = vrot.slane %v1594, 2
        %v1655 = vsel %vm344, %v1653, %v1654
        %v1656 = vrot.slane %v1595, 2
        %v1657 = vsel %vm344, %v1654, %v1656
        %v1658 = vrot.slane %v1596, 2
        %v1659 = vrot.slane %v1597, 2
        %v1660 = vsel %vm344, %v1658, %v1659
        %v1661 = vrot.slane %v1598, 2
        %v1662 = vsel %vm344, %v1659, %v1661
        %v1663 = vrot.slane %v1599, 2
        %v1664 = vrot.slane %v1600, 2
        %v1665 = vsel %vm344, %v1663, %v1664
        %v1666 = vrot.slane %v1601, 2
        %v1667 = vsel %vm344, %v1664, %v1666
        %v1668 = vrot.slane %v1602, 2
        %v1669 = vrot.slane %v1603, 2
        %v1670 = vsel %vm344, %v1668, %v1669
        %v1671 = vrot.slane %v1604, 2
        %v1672 = vsel %vm344, %v1669, %v1671
        %v1681 = vadd.f32 %v1645, %v1655
        %v1682 = vadd.f32 %v1646, %v1657
        %v1683 = vadd.f32 %v1647, %v1660
        %v1684 = vadd.f32 %v1648, %v1662
        %v1685 = vadd.f32 %v1649, %v1665
        %v1686 = vadd.f32 %v1650, %v1667
        %v1687 = vadd.f32 %v1651, %v1670
        %v1688 = vadd.f32 %v1652, %v1672
        %1689 = vrot.lane.b32.xlu0 %v1681, 1
        %v1690 = vpop.permute.xlu0 %1689
        %1691 = vrot.lane.b32.xlu0 %v1682, 1
        %v1692 = vpop.permute.xlu0 %1691
        %1693 = vrot.lane.b32.xlu0 %v1683, 1
        %v1694 = vpop.permute.xlu0 %1693
        %1695 = vrot.lane.b32.xlu0 %v1684, 1
        %v1696 = vpop.permute.xlu0 %1695
        %1697 = vrot.lane.b32.xlu0 %v1685, 1
        %v1698 = vpop.permute.xlu0 %1697
        %1699 = vrot.lane.b32.xlu0 %v1686, 1
        %v1700 = vpop.permute.xlu0 %1699
        %1701 = vrot.lane.b32.xlu0 %v1687, 1
        %v1702 = vpop.permute.xlu0 %1701
        %1703 = vrot.lane.b32.xlu0 %v1688, 1
        %v1704 = vpop.permute.xlu0 %1703
        %v1705 = vadd.f32 %v1681, %v1690
        %v1706 = vadd.f32 %v1682, %v1692
        %v1707 = vadd.f32 %v1683, %v1694
        %v1708 = vadd.f32 %v1684, %v1696
        %v1709 = vadd.f32 %v1685, %v1698
        %v1710 = vadd.f32 %v1686, %v1700
        %v1711 = vadd.f32 %v1687, %v1702
        %v1712 = vadd.f32 %v1688, %v1704
        %1713 = vrot.lane.b32.xlu0 %v1681, 127
        %v1714 = vpop.permute.xlu0 %1713
        %1715 = vrot.lane.b32.xlu0 %v1682, 127
        %v1716 = vpop.permute.xlu0 %1715
        %1717 = vrot.lane.b32.xlu0 %v1683, 127
        %v1718 = vpop.permute.xlu0 %1717
        %1719 = vrot.lane.b32.xlu0 %v1684, 127
        %v1720 = vpop.permute.xlu0 %1719
        %1721 = vrot.lane.b32.xlu0 %v1685, 127
        %v1722 = vpop.permute.xlu0 %1721
        %1723 = vrot.lane.b32.xlu0 %v1686, 127
        %v1724 = vpop.permute.xlu0 %1723
        %1725 = vrot.lane.b32.xlu0 %v1687, 127
        %v1726 = vpop.permute.xlu0 %1725
        %1727 = vrot.lane.b32.xlu0 %v1688, 127
        %v1728 = vpop.permute.xlu0 %1727
        %v1729 = vadd.f32 %v1705, %v1714
        %v1730 = vadd.f32 %v1706, %v1716
        %v1731 = vadd.f32 %v1707, %v1718
        %v1732 = vadd.f32 %v1708, %v1720
        %v1733 = vadd.f32 %v1709, %v1722
        %v1734 = vadd.f32 %v1710, %v1724
        %v1735 = vadd.f32 %v1711, %v1726
        %v1736 = vadd.f32 %v1712, %v1728
        %v1737 = vmul.f32 %v1681, 2.0
        %v1738 = vmul.f32 %v1682, 2.0
        %v1739 = vmul.f32 %v1683, 2.0
        %v1740 = vmul.f32 %v1684, 2.0
        %v1741 = vmul.f32 %v1685, 2.0
        %v1742 = vmul.f32 %v1686, 2.0
        %v1743 = vmul.f32 %v1687, 2.0
        %v1744 = vmul.f32 %v1688, 2.0
        %1753 = vrot.lane.b32.xlu0 %v1737, 127
        %v1754 = vpop.permute.xlu0 %1753
        %1755 = vrot.lane.b32.xlu0 %v1738, 127
        %v1756 = vpop.permute.xlu0 %1755
        %1757 = vrot.lane.b32.xlu0 %v1739, 127
        %v1758 = vpop.permute.xlu0 %1757
        %1759 = vrot.lane.b32.xlu0 %v1740, 127
        %v1760 = vpop.permute.xlu0 %1759
        %1761 = vrot.lane.b32.xlu0 %v1741, 127
        %v1762 = vpop.permute.xlu0 %1761
        %1763 = vrot.lane.b32.xlu0 %v1742, 127
        %v1764 = vpop.permute.xlu0 %1763
        %1765 = vrot.lane.b32.xlu0 %v1743, 127
        %v1766 = vpop.permute.xlu0 %1765
        %1767 = vrot.lane.b32.xlu0 %v1744, 127
        %v1768 = vpop.permute.xlu0 %1767
        %v1777 = vadd.f32 %v1681, %v1754
        %v1778 = vadd.f32 %v1682, %v1756
        %v1779 = vadd.f32 %v1683, %v1758
        %v1780 = vadd.f32 %v1684, %v1760
        %v1781 = vadd.f32 %v1685, %v1762
        %v1782 = vadd.f32 %v1686, %v1764
        %v1783 = vadd.f32 %v1687, %v1766
        %v1784 = vadd.f32 %v1688, %v1768
        %1786 = vset.pattern.permute.xlu0 0
        %1787 = vperm.xlu0 %1786, %v1777
        %v1788 = vpop.permute.xlu0 %1787
        %1791 = vset.pattern.permute.xlu0 0
        %1792 = vperm.xlu0 %1791, %v1778
        %v1793 = vpop.permute.xlu0 %1792
        %1796 = vset.pattern.permute.xlu0 0
        %1797 = vperm.xlu0 %1796, %v1779
        %v1798 = vpop.permute.xlu0 %1797
        %1801 = vset.pattern.permute.xlu0 0
        %1802 = vperm.xlu0 %1801, %v1780
        %v1803 = vpop.permute.xlu0 %1802
        %1806 = vset.pattern.permute.xlu0 0
        %1807 = vperm.xlu0 %1806, %v1781
        %v1808 = vpop.permute.xlu0 %1807
        %1811 = vset.pattern.permute.xlu0 0
        %1812 = vperm.xlu0 %1811, %v1782
        %v1813 = vpop.permute.xlu0 %1812
        %1816 = vset.pattern.permute.xlu0 0
        %1817 = vperm.xlu0 %1816, %v1783
        %v1818 = vpop.permute.xlu0 %1817
        %1821 = vset.pattern.permute.xlu0 0
        %1822 = vperm.xlu0 %1821, %v1784
        %v1823 = vpop.permute.xlu0 %1822
        %v1825 = vsel %vm481, %v1788, %v1729
        %v1826 = vsel %vm481, %v1793, %v1730
        %v1827 = vsel %vm481, %v1798, %v1731
        %v1828 = vsel %vm481, %v1803, %v1732
        %v1829 = vsel %vm481, %v1808, %v1733
        %v1830 = vsel %vm481, %v1813, %v1734
        %v1831 = vsel %vm481, %v1818, %v1735
        %v1832 = vsel %vm481, %v1823, %v1736
        %1833 = vrot.lane.b32.xlu0 %v1737, 1
        %v1834 = vpop.permute.xlu0 %1833
        %1835 = vrot.lane.b32.xlu0 %v1738, 1
        %v1836 = vpop.permute.xlu0 %1835
        %1837 = vrot.lane.b32.xlu0 %v1739, 1
        %v1838 = vpop.permute.xlu0 %1837
        %1839 = vrot.lane.b32.xlu0 %v1740, 1
        %v1840 = vpop.permute.xlu0 %1839
        %1841 = vrot.lane.b32.xlu0 %v1741, 1
        %v1842 = vpop.permute.xlu0 %1841
        %1843 = vrot.lane.b32.xlu0 %v1742, 1
        %v1844 = vpop.permute.xlu0 %1843
        %1845 = vrot.lane.b32.xlu0 %v1743, 1
        %v1846 = vpop.permute.xlu0 %1845
        %1847 = vrot.lane.b32.xlu0 %v1744, 1
        %v1848 = vpop.permute.xlu0 %1847
        %v1857 = vadd.f32 %v1681, %v1834
        %v1858 = vadd.f32 %v1682, %v1836
        %v1859 = vadd.f32 %v1683, %v1838
        %v1860 = vadd.f32 %v1684, %v1840
        %v1861 = vadd.f32 %v1685, %v1842
        %v1862 = vadd.f32 %v1686, %v1844
        %v1863 = vadd.f32 %v1687, %v1846
        %v1864 = vadd.f32 %v1688, %v1848
        %1866 = vset.pattern.permute.xlu0 127
        %1867 = vperm.xlu0 %1866, %v1857
        %v1868 = vpop.permute.xlu0 %1867
        %1871 = vset.pattern.permute.xlu0 127
        %1872 = vperm.xlu0 %1871, %v1858
        %v1873 = vpop.permute.xlu0 %1872
        %1876 = vset.pattern.permute.xlu0 127
        %1877 = vperm.xlu0 %1876, %v1859
        %v1878 = vpop.permute.xlu0 %1877
        %1881 = vset.pattern.permute.xlu0 127
        %1882 = vperm.xlu0 %1881, %v1860
        %v1883 = vpop.permute.xlu0 %1882
        %1886 = vset.pattern.permute.xlu0 127
        %1887 = vperm.xlu0 %1886, %v1861
        %v1888 = vpop.permute.xlu0 %1887
        %1891 = vset.pattern.permute.xlu0 127
        %1892 = vperm.xlu0 %1891, %v1862
        %v1893 = vpop.permute.xlu0 %1892
        %1896 = vset.pattern.permute.xlu0 127
        %1897 = vperm.xlu0 %1896, %v1863
        %v1898 = vpop.permute.xlu0 %1897
        %1901 = vset.pattern.permute.xlu0 127
        %1902 = vperm.xlu0 %1901, %v1864
        %v1903 = vpop.permute.xlu0 %1902
        %v1905 = vsel %vm564, %v1868, %v1825
        %v1906 = vsel %vm564, %v1873, %v1826
        %v1907 = vsel %vm564, %v1878, %v1827
        %v1908 = vsel %vm564, %v1883, %v1828
        %v1909 = vsel %vm564, %v1888, %v1829
        %v1910 = vsel %vm564, %v1893, %v1830
        %v1911 = vsel %vm564, %v1898, %v1831
        %v1912 = vsel %vm564, %v1903, %v1832
        %v1913 = vmul.f32 %v1905, 0.11111111
        %v1914 = vmul.f32 %v1906, 0.11111111
        %v1915 = vmul.f32 %v1907, 0.11111111
        %v1916 = vmul.f32 %v1908, 0.11111111
        %v1917 = vmul.f32 %v1909, 0.11111111
        %v1918 = vmul.f32 %v1910, 0.11111111
        %v1919 = vmul.f32 %v1911, 0.11111111
        %v1920 = vmul.f32 %v1912, 0.11111111
        %v1921 = vmul.f32 %v613, %v613
        %v1922 = vmul.f32 %v614, %v614
        %v1923 = vmul.f32 %v615, %v615
        %v1924 = vmul.f32 %v616, %v616
        %v1925 = vmul.f32 %v617, %v617
        %v1926 = vmul.f32 %v618, %v618
        %v1927 = vmul.f32 %v619, %v619
        %v1928 = vmul.f32 %v620, %v620
        %v1929 = vmul.f32 %v929, %v929
        %v1930 = vmul.f32 %v930, %v930
        %v1931 = vmul.f32 %v931, %v931
        %v1932 = vmul.f32 %v932, %v932
        %v1933 = vmul.f32 %v933, %v933
        %v1934 = vmul.f32 %v934, %v934
        %v1935 = vmul.f32 %v935, %v935
        %v1936 = vmul.f32 %v936, %v936
        %v1937 = vmul.f32 %v613, %v929
        %v1938 = vmul.f32 %v614, %v930
        %v1939 = vmul.f32 %v615, %v931
        %v1940 = vmul.f32 %v616, %v932
        %v1941 = vmul.f32 %v617, %v933
        %v1942 = vmul.f32 %v618, %v934
        %v1943 = vmul.f32 %v619, %v935
        %v1944 = vmul.f32 %v620, %v936
        %v1945 = vsub.f32 %v1257, %v1921
        %v1946 = vsub.f32 %v1258, %v1922
        %v1947 = vsub.f32 %v1259, %v1923
        %v1948 = vsub.f32 %v1260, %v1924
        %v1949 = vsub.f32 %v1261, %v1925
        %v1950 = vsub.f32 %v1262, %v1926
        %v1951 = vsub.f32 %v1263, %v1927
        %v1952 = vsub.f32 %v1264, %v1928
        %v1953 = vsub.f32 %v1585, %v1929
        %v1954 = vsub.f32 %v1586, %v1930
        %v1955 = vsub.f32 %v1587, %v1931
        %v1956 = vsub.f32 %v1588, %v1932
        %v1957 = vsub.f32 %v1589, %v1933
        %v1958 = vsub.f32 %v1590, %v1934
        %v1959 = vsub.f32 %v1591, %v1935
        %v1960 = vsub.f32 %v1592, %v1936
        %v1961 = vsub.f32 %v1913, %v1937
        %v1962 = vsub.f32 %v1914, %v1938
        %v1963 = vsub.f32 %v1915, %v1939
        %v1964 = vsub.f32 %v1916, %v1940
        %v1965 = vsub.f32 %v1917, %v1941
        %v1966 = vsub.f32 %v1918, %v1942
        %v1967 = vsub.f32 %v1919, %v1943
        %v1968 = vsub.f32 %v1920, %v1944
        %v1969 = vmul.f32 %v1937, 2.0
        %v1970 = vmul.f32 %v1938, 2.0
        %v1971 = vmul.f32 %v1939, 2.0
        %v1972 = vmul.f32 %v1940, 2.0
        %v1973 = vmul.f32 %v1941, 2.0
        %v1974 = vmul.f32 %v1942, 2.0
        %v1975 = vmul.f32 %v1943, 2.0
        %v1976 = vmul.f32 %v1944, 2.0
        %v1977 = vadd.f32 %v1969, 0.0001
        %v1978 = vadd.f32 %v1970, 0.0001
        %v1979 = vadd.f32 %v1971, 0.0001
        %v1980 = vadd.f32 %v1972, 0.0001
        %v1981 = vadd.f32 %v1973, 0.0001
        %v1982 = vadd.f32 %v1974, 0.0001
        %v1983 = vadd.f32 %v1975, 0.0001
        %v1984 = vadd.f32 %v1976, 0.0001
        %v1985 = vmul.f32 %v1961, 2.0
        %v1986 = vmul.f32 %v1962, 2.0
        %v1987 = vmul.f32 %v1963, 2.0
        %v1988 = vmul.f32 %v1964, 2.0
        %v1989 = vmul.f32 %v1965, 2.0
        %v1990 = vmul.f32 %v1966, 2.0
        %v1991 = vmul.f32 %v1967, 2.0
        %v1992 = vmul.f32 %v1968, 2.0
        %v1993 = vadd.f32 %v1985, 0.0009
        %v1994 = vadd.f32 %v1986, 0.0009
        %v1995 = vadd.f32 %v1987, 0.0009
        %v1996 = vadd.f32 %v1988, 0.0009
        %v1997 = vadd.f32 %v1989, 0.0009
        %v1998 = vadd.f32 %v1990, 0.0009
        %v1999 = vadd.f32 %v1991, 0.0009
        %v2000 = vadd.f32 %v1992, 0.0009
        %v2001 = vmul.f32 %v1977, %v1993
        %v2002 = vmul.f32 %v1978, %v1994
        %v2003 = vmul.f32 %v1979, %v1995
        %v2004 = vmul.f32 %v1980, %v1996
        %v2005 = vmul.f32 %v1981, %v1997
        %v2006 = vmul.f32 %v1982, %v1998
        %v2007 = vmul.f32 %v1983, %v1999
        %v2008 = vmul.f32 %v1984, %v2000
        %v2009 = vadd.f32 %v1921, %v1929
        %v2010 = vadd.f32 %v1922, %v1930
        %v2011 = vadd.f32 %v1923, %v1931
        %v2012 = vadd.f32 %v1924, %v1932
        %v2013 = vadd.f32 %v1925, %v1933
        %v2014 = vadd.f32 %v1926, %v1934
        %v2015 = vadd.f32 %v1927, %v1935
        %v2016 = vadd.f32 %v1928, %v1936
        %v2017 = vadd.f32 %v2009, 0.0001
        %v2018 = vadd.f32 %v2010, 0.0001
        %v2019 = vadd.f32 %v2011, 0.0001
        %v2020 = vadd.f32 %v2012, 0.0001
        %v2021 = vadd.f32 %v2013, 0.0001
        %v2022 = vadd.f32 %v2014, 0.0001
        %v2023 = vadd.f32 %v2015, 0.0001
        %v2024 = vadd.f32 %v2016, 0.0001
        %v2025 = vadd.f32 %v1945, %v1953
        %v2026 = vadd.f32 %v1946, %v1954
        %v2027 = vadd.f32 %v1947, %v1955
        %v2028 = vadd.f32 %v1948, %v1956
        %v2029 = vadd.f32 %v1949, %v1957
        %v2030 = vadd.f32 %v1950, %v1958
        %v2031 = vadd.f32 %v1951, %v1959
        %v2032 = vadd.f32 %v1952, %v1960
        %v2033 = vadd.f32 %v2025, 0.0009
        %v2034 = vadd.f32 %v2026, 0.0009
        %v2035 = vadd.f32 %v2027, 0.0009
        %v2036 = vadd.f32 %v2028, 0.0009
        %v2037 = vadd.f32 %v2029, 0.0009
        %v2038 = vadd.f32 %v2030, 0.0009
        %v2039 = vadd.f32 %v2031, 0.0009
        %v2040 = vadd.f32 %v2032, 0.0009
        %v2041 = vmul.f32 %v2017, %v2033
        %v2042 = vmul.f32 %v2018, %v2034
        %v2043 = vmul.f32 %v2019, %v2035
        %v2044 = vmul.f32 %v2020, %v2036
        %v2045 = vmul.f32 %v2021, %v2037
        %v2046 = vmul.f32 %v2022, %v2038
        %v2047 = vmul.f32 %v2023, %v2039
        %v2048 = vmul.f32 %v2024, %v2040
        %v2049 = vrcp.pop %v2041
        %v2050 = vmul.f32 %v2001, %v2049
        %v2051 = vrcp.pop %v2042
        %v2052 = vmul.f32 %v2002, %v2051
        %v2053 = vrcp.pop %v2043
        %v2054 = vmul.f32 %v2003, %v2053
        %v2055 = vrcp.pop %v2044
        %v2056 = vmul.f32 %v2004, %v2055
        %v2057 = vrcp.pop %v2045
        %v2058 = vmul.f32 %v2005, %v2057
        %v2059 = vrcp.pop %v2046
        %v2060 = vmul.f32 %v2006, %v2059
        %v2061 = vrcp.pop %v2047
        %v2062 = vmul.f32 %v2007, %v2061
        %v2063 = vrcp.pop %v2048
        %v2064 = vmul.f32 %v2008, %v2063
        %v2065 = vsub.f32 1.0, %v2050
        %v2066 = vsub.f32 1.0, %v2052
        %v2067 = vsub.f32 1.0, %v2054
        %v2068 = vsub.f32 1.0, %v2056
        %v2069 = vsub.f32 1.0, %v2058
        %v2070 = vsub.f32 1.0, %v2060
        %v2071 = vsub.f32 1.0, %v2062
        %v2072 = vsub.f32 1.0, %v2064
        %v2073 = vmul.f32 %v2065, 0.5
        %v2074 = vmul.f32 %v2066, 0.5
        %v2075 = vmul.f32 %v2067, 0.5
        %v2076 = vmul.f32 %v2068, 0.5
        %v2077 = vmul.f32 %v2069, 0.5
        %v2078 = vmul.f32 %v2070, 0.5
        %v2079 = vmul.f32 %v2071, 0.5
        %v2080 = vmul.f32 %v2072, 0.5
        %v2081 = vmax.f32 %v2073, 0.0
        %v2082 = vmax.f32 %v2074, 0.0
        %v2083 = vmax.f32 %v2075, 0.0
        %v2084 = vmax.f32 %v2076, 0.0
        %v2085 = vmax.f32 %v2077, 0.0
        %v2086 = vmax.f32 %v2078, 0.0
        %v2087 = vmax.f32 %v2079, 0.0
        %v2088 = vmax.f32 %v2080, 0.0
        %v2089 = vmin.f32 %v2081, 1.0
        %v2090 = vmin.f32 %v2082, 1.0
        %v2091 = vmin.f32 %v2083, 1.0
        %v2092 = vmin.f32 %v2084, 1.0
        %v2093 = vmin.f32 %v2085, 1.0
        %v2094 = vmin.f32 %v2086, 1.0
        %v2095 = vmin.f32 %v2087, 1.0
        %v2096 = vmin.f32 %v2088, 1.0
        %2097 = vst [vmem:[%s203] sm:$0xff] %v2089
        %2098 = vst [vmem:[%s203 + $0x8] sm:$0xff] %v2090
        %2099 = vst [vmem:[%s203 + $0x10] sm:$0xff] %v2091
        %2100 = vst [vmem:[%s203 + $0x18] sm:$0xff] %v2092
        %2101 = vst [vmem:[%s203 + $0x20] sm:$0xff] %v2093
        %2102 = vst [vmem:[%s203 + $0x28] sm:$0xff] %v2094
        %2103 = vst [vmem:[%s203 + $0x30] sm:$0xff] %v2095
        %2104 = vst [vmem:[%s203 + $0x38] sm:$0xff] %v2096
        %s2105 = sand.u32 %s82, 1
        %s2106 = scalar_lea.sflag [#allocation6], %s2105
        %s2107 = sand.u32 %s82, 1
        %s2108 = smul.addr %s2107, 64
        %s2109 = scalar_lea.vmem [#allocation9], %s2108
        // Predicated region
        $region37: #{tpu_custom_call.1} parent=27 // pred_check
          %p2110 = pneg %p92
        $region38: #{tpu_custom_call.1} parent=27 // pred_check_branch
          %2112 = sbr.rel (%p2110) target = $region40
        $region39: #{tpu_custom_call.1} parent=27 // pred_region
          %s2113 = smul.u32 4, %s22
          %s2115 = ssub.s32 1024, 1024
          %2116 = vsyncadd %s2106, %s2115
          %s2117 = smul.addr %s2113, 2
          %s2118 = smul.addr %s2117, 128
          %s2119 = scalar_lea.hbm %s2, %s2118
          %s2120 = sshll.u32 %s2109, 4
          %s2121 = int_to_ptr.vmem [resolvable:$true] %s2120
          %2126 = dma.vmem_to_hbm [thread:$0]  %s2121, 1024, %s2119, %s2106, 128, 128, 8
        $region40: #{tpu_custom_call.1} parent=27 // pred_fallthru
          _
      $region28: #{tpu_custom_call.1} parent=5 // pred_fallthru
        _
      %p2127 = scmp.le.s32.totalorder 2, %s17
      // Predicated region
      $region41: #{tpu_custom_call.1} parent=5 // pred_check
        %p2128 = pneg %p2127
      $region42: #{tpu_custom_call.1} parent=5 // pred_check_branch
        %2130 = sbr.rel (%p2128) target = $region44
      $region43: #{tpu_custom_call.1} parent=5 // pred_region
        %s2131 = ssub.s32 %s17, 2
        // Predicated region
        $region45: #{tpu_custom_call.1} parent=43 // pred_check
          %p2132 = pneg %p98
        $region46: #{tpu_custom_call.1} parent=43 // pred_check_branch
          %2134 = sbr.rel (%p2132) target = $region48
        $region47: #{tpu_custom_call.1} parent=43 // pred_region
          %s2135 = sand.u32 %s83, 1
          %s2136 = scalar_lea.sflag [#allocation6], %s2135
          %s2137 = sand.u32 %s83, 1
          %s2138 = smul.addr %s2137, 64
          %s2139 = scalar_lea.vmem [#allocation9], %s2138
          %2140 = dma.done %s2136, 1024
        $region48: #{tpu_custom_call.1} parent=43 // pred_fallthru
          _
      $region44: #{tpu_custom_call.1} parent=5 // pred_fallthru
        _
    $region6: #{tpu_custom_call.1} parent=1 // loop_footer
      %s21 = sadd.s32 1, %s17
    $region7: #{tpu_custom_call.1} parent=1 // loop_footer_branch
      %16 = sbr.rel target = $region3
    $region8: #{tpu_custom_call.1} parent=1 // loop_exit
      _
    %2141 = vsyncpa [#allocation5], 1
    %s2142 = scalar_lea.sflag [#allocation5], 1
    %2143 = vsyncpa %s2142, 1
    %2144 = vsyncpa [#allocation8], 1
    %s2145 = scalar_lea.sflag [#allocation8], 1
    %2146 = vsyncpa %s2145, 1
    %2147 = vsyncpa [#allocation6], 1
    %s2148 = scalar_lea.sflag [#allocation6], 1
    %2149 = vsyncpa %s2148, 1

</llo_original>
